<compile_context>
chip_gen: v6e
topology: v6e:2x2x1
jax: 0.10.0
libtpu: 0.0.40
codegen_flags: <defaults>
</compile_context>

<pallas_src>
import jax
import jax.numpy as jnp
from jax.experimental import pallas as pl
from jax.experimental.pallas import tpu as pltpu

EPS = 1e-5      # PyTorch BatchNorm default eps
V_TH = 1.0      # spikingjelly IFNode default v_threshold (v_reset = 0)
TILE_M = 4096   # lane tile for conv kernels (multiple of 512)


# ----------------------------- Pallas kernels ------------------------------ #

def _conv_spike_kernel(pT_ref, w_ref, b_ref, o_ref):
    # (Cout, KKC)f32 @ (KKC, TM) -> lane-dense (Cout, TM); bias + IF spike fused.
    # Patch tile may be bf16 (lossless spike storage); compute stays f32.
    x = pT_ref[...].astype(jnp.float32)
    acc = jnp.dot(w_ref[...], x, preferred_element_type=jnp.float32)
    o_ref[...] = (acc + b_ref[...] >= V_TH).astype(o_ref.dtype)


def _fc_chain_kernel(x_ref, w1_ref, b1_ref, g3_ref, be3_ref,
                     w2_ref, b2_ref, g4_ref, be4_ref,
                     w3_ref, b3_ref, o_ref):
    # Whole fc head in one kernel: fc1+IF3+BN3 -> fc2+IF4+BN4 -> fc3+IF5.
    # BN2 (from the conv block) is already folded into w1/b1 by the caller.
    # BN3/BN4 are BatchNorm1d(num_features=1): one global mean/var over the whole
    # (N, Out) spike slab; spikes are {0,1} so biased var == m - m^2 exactly.
    x = x_ref[...].astype(jnp.float32)                              # (N, 400)

    s = (jnp.dot(x, w1_ref[...], preferred_element_type=jnp.float32)
         + b1_ref[...] >= V_TH).astype(jnp.float32)                 # (N, 120)
    m = jnp.mean(jnp.mean(s, axis=1, keepdims=True), axis=0, keepdims=True)
    inv = jax.lax.rsqrt(m - m * m + EPS)
    y = (s - m) * (inv * g3_ref[...]) + be3_ref[...]

    s = (jnp.dot(y, w2_ref[...], preferred_element_type=jnp.float32)
         + b2_ref[...] >= V_TH).astype(jnp.float32)                 # (N, 84)
    m = jnp.mean(jnp.mean(s, axis=1, keepdims=True), axis=0, keepdims=True)
    inv = jax.lax.rsqrt(m - m * m + EPS)
    y = (s - m) * (inv * g4_ref[...]) + be4_ref[...]

    o_ref[...] = (jnp.dot(y, w3_ref[...], preferred_element_type=jnp.float32)
                  + b3_ref[...] >= V_TH).astype(o_ref.dtype)        # (N, 10)


# --------------------------- pallas_call wrappers --------------------------- #

def conv_spike(patchesT, w, b):
    """Fused conv(as matmul)+bias+spike. patchesT: (KKC, M); out (Cout, M) bf16."""
    KKC, M = patchesT.shape
    Cout = w.shape[0]
    tm = M if M <= TILE_M else TILE_M            # full-extent block when small
    cols = lambda t: (0, t)
    full = lambda t: (0, 0)
    return pl.pallas_call(
        _conv_spike_kernel,
        grid=(pl.cdiv(M, tm),),
        in_specs=[pl.BlockSpec((KKC, tm), cols),
                  pl.BlockSpec((Cout, KKC), full),
                  pl.BlockSpec((Cout, 1), full)],
        out_specs=pl.BlockSpec((Cout, tm), cols),
        out_shape=jax.ShapeDtypeStruct((Cout, M), jnp.bfloat16),
        compiler_params=pltpu.CompilerParams(dimension_semantics=("parallel",)),
    )(patchesT, w, b)


def fc_chain(flat, w1, b1, g3, be3, w2, b2, g4, be4, w3, b3):
    """Single ungridded kernel for the whole fc head; intermediates stay in VMEM."""
    N_ = flat.shape[0]
    return pl.pallas_call(
        _fc_chain_kernel,
        out_shape=jax.ShapeDtypeStruct((N_, w3.shape[1]), jnp.float32),
    )(flat, w1, b1, g3, be3, w2, b2, g4, be4, w3, b3)


# ------------------------------- XLA glue ----------------------------------- #

def im2col_T(x_cnhw, k, pad, out_dtype):
    """(Cin, N, H, W) -> (Cin*k*k, N*OH*OW); rows ordered (ci, kh, kw) to match
    torch's weight.reshape(Cout, Cin*KH*KW); cols ordered (n, oh, ow)."""
    if pad:
        x_cnhw = jnp.pad(x_cnhw, ((0, 0), (0, 0), (pad, pad), (pad, pad)))
    C, N, H, W = x_cnhw.shape
    OH, OW = H - k + 1, W - k + 1
    slices = [x_cnhw[:, :, i:i + OH, j:j + OW] for i in range(k) for j in range(k)]
    p = jnp.stack(slices, axis=1)                       # (C, k*k, N, OH, OW)
    return p.reshape(C * k * k, N * OH * OW).astype(out_dtype), (N, OH, OW)


def avg_pool2_cnhw(y):
    # 2x2 average pool on a (C, N, H, W) spike tensor; {0..4}/4 is exact in bf16.
    C, N, H, W = y.shape
    return y.reshape(C, N, H // 2, 2, W // 2, 2).mean(axis=(3, 5))


def bn_affine_from_spike_mean(mean, gamma, beta):
    # Training-mode BN on {0,1} spikes: biased variance = m - m^2 (exact).
    a = gamma * jax.lax.rsqrt(mean - mean * mean + EPS)
    return a, beta - mean * a


# ------------------------------ Model --------------------------------------- #

def init_params(key):
    ks = jax.random.split(key, 5)
    f32 = jnp.float32
    return {
        # conv weights pre-reshaped to (Cout, Cin*KH*KW); torch: (Cout,Cin,5,5)
        "conv1_w": (jax.random.normal(ks[0], (6, 1, 5, 5), f32) * 0.5).reshape(6, 25),
        "conv1_b": jnp.zeros((6, 1), f32),
        "bn1_g": jnp.ones((6,), f32), "bn1_b": jnp.zeros((6,), f32),
        "conv2_w": (jax.random.normal(ks[1], (16, 6, 5, 5), f32) * 0.2).reshape(16, 150),
        "conv2_b": jnp.zeros((16, 1), f32),
        "bn2_g": jnp.ones((16,), f32), "bn2_b": jnp.zeros((16,), f32),
        # fc weights pre-transposed to (in, out); torch stores (out, in)
        "fc1_w": jnp.transpose(jax.random.normal(ks[2], (120, 400), f32) * 0.1),
        "fc1_b": jnp.zeros((1, 120), f32),
        "bn3_g": jnp.ones((1, 1), f32), "bn3_b": jnp.zeros((1, 1), f32),
        "fc2_w": jnp.transpose(jax.random.normal(ks[3], (84, 120), f32) * 0.2),
        "fc2_b": jnp.zeros((1, 84), f32),
        "bn4_g": jnp.ones((1, 1), f32), "bn4_b": jnp.zeros((1, 1), f32),
        "fc3_w": jnp.transpose(jax.random.normal(ks[4], (10, 84), f32) * 0.3),
        "fc3_b": jnp.zeros((1, 10), f32),
    }


def snn_lenet_forward(x_nchw, p):
    N = x_nchw.shape[0]
    x = jnp.transpose(x_nchw, (1, 0, 2, 3))                 # (1, N, 28, 28)

    # conv1 (pad=2) + IF1. Raw input stays f32 (arbitrary floats); BN1 is applied,
    # commuted past pool1, by folding its affine into conv2's weights below.
    pT, (n, oh, ow) = im2col_T(x, 5, pad=2, out_dtype=jnp.float32)   # (25, N*784)
    spk = conv_spike(pT, p["conv1_w"], p["conv1_b"])        # (6, N*784) bf16 spikes
    pooled = avg_pool2_cnhw(spk.reshape(6, n, oh, ow))      # (6, N, 14, 14) bf16
    m = jnp.mean(pooled, axis=(1, 2, 3), dtype=jnp.float32)  # == per-channel spike mean
    a, c = bn_affine_from_spike_mean(m, p["bn1_g"], p["bn1_b"])
    # Fold BN1 affine into conv2 weight/bias (tiny f32 XLA ops; exact).
    w2 = p["conv2_w"] * jnp.repeat(a, 25)[None, :]
    b2 = p["conv2_b"] + (p["conv2_w"] @ jnp.repeat(c, 25))[:, None]

    # conv2 (no pad) + IF2. Patches come from pooled spikes -> bf16 is lossless.
    pT, (n, oh, ow) = im2col_T(pooled, 5, pad=0, out_dtype=jnp.bfloat16)  # (150, N*100)
    spk = conv_spike(pT, w2, b2)                            # (16, N*100) bf16
    pooled = avg_pool2_cnhw(spk.reshape(16, n, oh, ow))     # (16, N, 5, 5) bf16
    m = jnp.mean(pooled, axis=(1, 2, 3), dtype=jnp.float32)
    a, c = bn_affine_from_spike_mean(m, p["bn2_g"], p["bn2_b"])
    # Fold BN2 affine (commuted past pool2) into fc1 weight/bias (exact).
    w1 = p["fc1_w"] * jnp.repeat(a, 25)[:, None]
    b1 = p["fc1_b"] + (jnp.repeat(c, 25) @ p["fc1_w"])[None, :]

    # flatten exactly like torch's .view on NCHW: feature order (c, h, w)
    flat = jnp.transpose(pooled, (1, 0, 2, 3)).reshape(N, 400)   # (N, 400) bf16

    # fc1+IF3+BN3 + fc2+IF4+BN4 + fc3+IF5, all fused in one pallas_call.
    return fc_chain(flat, w1, b1, p["bn3_g"], p["bn3_b"],
                    p["fc2_w"], p["fc2_b"], p["bn4_g"], p["bn4_b"],
                    p["fc3_w"], p["fc3_b"])


if __name__ == "__main__":
    key = jax.random.PRNGKey(0)
    pkey, xkey = jax.random.split(key)
    params = init_params(pkey)
    # fc1 expects 400 = 16*5*5 features -> input must be (N, 1, 28, 28).
    x = jax.random.normal(xkey, (2, 1, 28, 28), jnp.float32)

    fwd = jax.jit(snn_lenet_forward)
    out = jax.block_until_ready(fwd(x, params))
    assert out.shape == (2, 10), out.shape
    assert out.dtype == jnp.float32
    assert bool(jnp.all(jnp.isfinite(out)))
    print("KERNEL_OK")
</pallas_src>

<mosaic_0001>
module attributes {stable_mosaic.version = 11 : i64} {
  func.func @_conv_spike_kernel(%arg0: i32, %arg1: memref<25x1568xf32, #tpu.memory_space<vmem>>, %arg2: memref<6x25xf32, #tpu.memory_space<vmem>>, %arg3: memref<6x1xf32, #tpu.memory_space<vmem>>, %arg4: memref<6x1568xbf16, #tpu.memory_space<vmem>>) attributes {dimension_semantics = [#tpu.dimension_semantics<parallel>], iteration_bounds = array<i64: 1>, scalar_prefetch = 0 : i64, scratch_operands = 0 : i64, tpu.core_type = #tpu.core_type<tc>, window_params = [{transform_indices = @transform_0, window_bounds = array<i64: 25, 1568>}, {pipeline_mode = #tpu.pipeline_mode<synchronous>, transform_indices = @transform_1, window_bounds = array<i64: 6, 25>}, {pipeline_mode = #tpu.pipeline_mode<synchronous>, transform_indices = @transform_2, window_bounds = array<i64: 6, 1>}, {transform_indices = @transform_3, window_bounds = array<i64: 6, 1568>}]} {
    %c0 = arith.constant 0 : index
    %c0_0 = arith.constant 0 : index
    %0 = vector.load %arg1[%c0, %c0_0] : memref<25x1568xf32, #tpu.memory_space<vmem>>, vector<25x1568xf32>
    %c0_1 = arith.constant 0 : index
    %c0_2 = arith.constant 0 : index
    %1 = vector.load %arg2[%c0_1, %c0_2] : memref<6x25xf32, #tpu.memory_space<vmem>>, vector<6x25xf32>
    %cst = arith.constant dense<0.000000e+00> : vector<6x1568xf32>
    %2 = tpu.matmul %1, %0, %cst {dimension_numbers = #tpu.dot_dimension_numbers<[1], [0], [0], [1], [0, 0, 1, 1], [], []>} : vector<6x25xf32>, vector<25x1568xf32>, vector<6x1568xf32> -> vector<6x1568xf32>
    %c0_3 = arith.constant 0 : index
    %c0_4 = arith.constant 0 : index
    %3 = vector.load %arg3[%c0_3, %c0_4] : memref<6x1xf32, #tpu.memory_space<vmem>>, vector<6x1xf32>
    %4 = vector.broadcast %3 : vector<6x1xf32> to vector<6x1568xf32>
    %5 = arith.addf %2, %4 : vector<6x1568xf32>
    %cst_5 = arith.constant 1.000000e+00 : f32
    %6 = vector.broadcast %cst_5 : f32 to vector<6x1568xf32>
    %7 = arith.cmpf oge, %5, %6 : vector<6x1568xf32>
    %8 = arith.extui %7 : vector<6x1568xi1> to vector<6x1568xi32>
    %9 = arith.sitofp %8 : vector<6x1568xi32> to vector<6x1568xf32>
    %10 = arith.truncf %9 : vector<6x1568xf32> to vector<6x1568xbf16>
    %c0_6 = arith.constant 0 : index
    %c0_7 = arith.constant 0 : index
    %11 = vector.load %arg4[%c0_6, %c0_7] : memref<6x1568xbf16, #tpu.memory_space<vmem>>, vector<6x1568xbf16>
    tpu.vector_store %arg4[%c0_6, %c0_7], %10 {strides = array<i32>} : memref<6x1568xbf16, #tpu.memory_space<vmem>>, vector<6x1568xbf16>,
    return
  }
  func.func @transform_0(%arg0: i32) -> (i32, i32) {
    %c0_i32 = arith.constant 0 : i32
    %c0_i32_0 = arith.constant 0 : i32
    return %c0_i32, %arg0 : i32, i32
  }
  func.func @transform_1(%arg0: i32) -> (i32, i32) {
    %c0_i32 = arith.constant 0 : i32
    %c0_i32_0 = arith.constant 0 : i32
    %c0_i32_1 = arith.constant 0 : i32
    return %c0_i32, %c0_i32_0 : i32, i32
  }
  func.func @transform_2(%arg0: i32) -> (i32, i32) {
    %c0_i32 = arith.constant 0 : i32
    %c0_i32_0 = arith.constant 0 : i32
    %c0_i32_1 = arith.constant 0 : i32
    return %c0_i32, %c0_i32_0 : i32, i32
  }
  func.func @transform_3(%arg0: i32) -> (i32, i32) {
    %c0_i32 = arith.constant 0 : i32
    %c0_i32_0 = arith.constant 0 : i32
    return %c0_i32, %arg0 : i32, i32
  }
}

module attributes {stable_mosaic.version = 11 : i64} {
  func.func @_conv_spike_kernel(%arg0: i32, %arg1: memref<150x200xbf16, #tpu.memory_space<vmem>>, %arg2: memref<16x150xf32, #tpu.memory_space<vmem>>, %arg3: memref<16x1xf32, #tpu.memory_space<vmem>>, %arg4: memref<16x200xbf16, #tpu.memory_space<vmem>>) attributes {dimension_semantics = [#tpu.dimension_semantics<parallel>], iteration_bounds = array<i64: 1>, scalar_prefetch = 0 : i64, scratch_operands = 0 : i64, tpu.core_type = #tpu.core_type<tc>, window_params = [{transform_indices = @transform_0, window_bounds = array<i64: 150, 200>}, {pipeline_mode = #tpu.pipeline_mode<synchronous>, transform_indices = @transform_1, window_bounds = array<i64: 16, 150>}, {pipeline_mode = #tpu.pipeline_mode<synchronous>, transform_indices = @transform_2, window_bounds = array<i64: 16, 1>}, {transform_indices = @transform_3, window_bounds = array<i64: 16, 200>}]} {
    %c0 = arith.constant 0 : index
    %c0_0 = arith.constant 0 : index
    %0 = vector.load %arg1[%c0, %c0_0] : memref<150x200xbf16, #tpu.memory_space<vmem>>, vector<150x200xbf16>
    %1 = arith.extf %0 : vector<150x200xbf16> to vector<150x200xf32>
    %c0_1 = arith.constant 0 : index
    %c0_2 = arith.constant 0 : index
    %2 = vector.load %arg2[%c0_1, %c0_2] : memref<16x150xf32, #tpu.memory_space<vmem>>, vector<16x150xf32>
    %cst = arith.constant dense<0.000000e+00> : vector<16x200xf32>
    %3 = tpu.matmul %2, %1, %cst {dimension_numbers = #tpu.dot_dimension_numbers<[1], [0], [0], [1], [0, 0, 1, 1], [], []>} : vector<16x150xf32>, vector<150x200xf32>, vector<16x200xf32> -> vector<16x200xf32>
    %c0_3 = arith.constant 0 : index
    %c0_4 = arith.constant 0 : index
    %4 = vector.load %arg3[%c0_3, %c0_4] : memref<16x1xf32, #tpu.memory_space<vmem>>, vector<16x1xf32>
    %5 = vector.broadcast %4 : vector<16x1xf32> to vector<16x200xf32>
    %6 = arith.addf %3, %5 : vector<16x200xf32>
    %cst_5 = arith.constant 1.000000e+00 : f32
    %7 = vector.broadcast %cst_5 : f32 to vector<16x200xf32>
    %8 = arith.cmpf oge, %6, %7 : vector<16x200xf32>
    %9 = arith.extui %8 : vector<16x200xi1> to vector<16x200xi32>
    %10 = arith.sitofp %9 : vector<16x200xi32> to vector<16x200xf32>
    %11 = arith.truncf %10 : vector<16x200xf32> to vector<16x200xbf16>
    %c0_6 = arith.constant 0 : index
    %c0_7 = arith.constant 0 : index
    %12 = vector.load %arg4[%c0_6, %c0_7] : memref<16x200xbf16, #tpu.memory_space<vmem>>, vector<16x200xbf16>
    tpu.vector_store %arg4[%c0_6, %c0_7], %11 {strides = array<i32>} : memref<16x200xbf16, #tpu.memory_space<vmem>>, vector<16x200xbf16>,
    return
  }
  func.func @transform_0(%arg0: i32) -> (i32, i32) {
    %c0_i32 = arith.constant 0 : i32
    %c0_i32_0 = arith.constant 0 : i32
    return %c0_i32, %arg0 : i32, i32
  }
  func.func @transform_1(%arg0: i32) -> (i32, i32) {
    %c0_i32 = arith.constant 0 : i32
    %c0_i32_0 = arith.constant 0 : i32
    %c0_i32_1 = arith.constant 0 : i32
    return %c0_i32, %c0_i32_0 : i32, i32
  }
  func.func @transform_2(%arg0: i32) -> (i32, i32) {
    %c0_i32 = arith.constant 0 : i32
    %c0_i32_0 = arith.constant 0 : i32
    %c0_i32_1 = arith.constant 0 : i32
    return %c0_i32, %c0_i32_0 : i32, i32
  }
  func.func @transform_3(%arg0: i32) -> (i32, i32) {
    %c0_i32 = arith.constant 0 : i32
    %c0_i32_0 = arith.constant 0 : i32
    return %c0_i32, %arg0 : i32, i32
  }
}

module attributes {stable_mosaic.version = 11 : i64} {
  func.func @_fc_chain_kernel(%arg0: memref<2x400xbf16, #tpu.memory_space<vmem>>, %arg1: memref<400x120xf32, #tpu.memory_space<vmem>>, %arg2: memref<1x120xf32, #tpu.memory_space<vmem>>, %arg3: memref<1x1xf32, #tpu.memory_space<vmem>>, %arg4: memref<1x1xf32, #tpu.memory_space<vmem>>, %arg5: memref<120x84xf32, #tpu.memory_space<vmem>>, %arg6: memref<1x84xf32, #tpu.memory_space<vmem>>, %arg7: memref<1x1xf32, #tpu.memory_space<vmem>>, %arg8: memref<1x1xf32, #tpu.memory_space<vmem>>, %arg9: memref<84x10xf32, #tpu.memory_space<vmem>>, %arg10: memref<1x10xf32, #tpu.memory_space<vmem>>, %arg11: memref<2x10xf32, #tpu.memory_space<vmem>>) attributes {dimension_semantics = [], scalar_prefetch = 0 : i64, scratch_operands = 0 : i64, tpu.core_type = #tpu.core_type<tc>} {
    %c0 = arith.constant 0 : index
    %c0_0 = arith.constant 0 : index
    %0 = vector.load %arg0[%c0, %c0_0] : memref<2x400xbf16, #tpu.memory_space<vmem>>, vector<2x400xbf16>
    %1 = arith.extf %0 : vector<2x400xbf16> to vector<2x400xf32>
    %c0_1 = arith.constant 0 : index
    %c0_2 = arith.constant 0 : index
    %2 = vector.load %arg1[%c0_1, %c0_2] : memref<400x120xf32, #tpu.memory_space<vmem>>, vector<400x120xf32>
    %cst = arith.constant dense<0.000000e+00> : vector<2x120xf32>
    %3 = tpu.matmul %1, %2, %cst {dimension_numbers = #tpu.dot_dimension_numbers<[1], [0], [0], [1], [0, 0, 1, 1], [], []>} : vector<2x400xf32>, vector<400x120xf32>, vector<2x120xf32> -> vector<2x120xf32>
    %c0_3 = arith.constant 0 : index
    %c0_4 = arith.constant 0 : index
    %4 = vector.load %arg2[%c0_3, %c0_4] : memref<1x120xf32, #tpu.memory_space<vmem>>, vector<1x120xf32>
    %5 = vector.broadcast %4 : vector<1x120xf32> to vector<2x120xf32>
    %6 = arith.addf %3, %5 : vector<2x120xf32>
    %cst_5 = arith.constant 1.000000e+00 : f32
    %7 = vector.broadcast %cst_5 : f32 to vector<2x120xf32>
    %8 = arith.cmpf oge, %6, %7 : vector<2x120xf32>
    %9 = arith.extui %8 : vector<2x120xi1> to vector<2x120xi32>
    %10 = arith.sitofp %9 : vector<2x120xi32> to vector<2x120xf32>
    %cst_6 = arith.constant dense<0.000000e+00> : vector<2xf32>
    %11 = vector.multi_reduction <add>, %10, %cst_6 [1] : vector<2x120xf32> to vector<2xf32>
    %12 = vector.shape_cast %11 : vector<2xf32> to vector<2x1xf32>
    %cst_7 = arith.constant 1.200000e+02 : f32
    %13 = vector.broadcast %cst_7 : f32 to vector<2x1xf32>
    %14 = arith.divf %12, %13 : vector<2x1xf32>
    %cst_8 = arith.constant dense<0.000000e+00> : vector<1xf32>
    %15 = vector.multi_reduction <add>, %14, %cst_8 [0] : vector<2x1xf32> to vector<1xf32>
    %16 = vector.shape_cast %15 : vector<1xf32> to vector<1x1xf32>
    %cst_9 = arith.constant 2.000000e+00 : f32
    %17 = vector.broadcast %cst_9 : f32 to vector<1x1xf32>
    %18 = arith.divf %16, %17 : vector<1x1xf32>
    %19 = arith.mulf %18, %18 : vector<1x1xf32>
    %20 = arith.subf %18, %19 : vector<1x1xf32>
    %cst_10 = arith.constant 9.99999974E-6 : f32
    %21 = vector.broadcast %cst_10 : f32 to vector<1x1xf32>
    %22 = arith.addf %20, %21 : vector<1x1xf32>
    %23 = math.rsqrt %22 : vector<1x1xf32>
    %24 = vector.broadcast %18 : vector<1x1xf32> to vector<2x120xf32>
    %25 = arith.subf %10, %24 : vector<2x120xf32>
    %c0_11 = arith.constant 0 : index
    %c0_12 = arith.constant 0 : index
    %26 = vector.load %arg3[%c0_11, %c0_12] : memref<1x1xf32, #tpu.memory_space<vmem>>, vector<1x1xf32>
    %27 = arith.mulf %23, %26 : vector<1x1xf32>
    %28 = vector.broadcast %27 : vector<1x1xf32> to vector<2x120xf32>
    %29 = arith.mulf %25, %28 : vector<2x120xf32>
    %c0_13 = arith.constant 0 : index
    %c0_14 = arith.constant 0 : index
    %30 = vector.load %arg4[%c0_13, %c0_14] : memref<1x1xf32, #tpu.memory_space<vmem>>, vector<1x1xf32>
    %31 = vector.broadcast %30 : vector<1x1xf32> to vector<2x120xf32>
    %32 = arith.addf %29, %31 : vector<2x120xf32>
    %c0_15 = arith.constant 0 : index
    %c0_16 = arith.constant 0 : index
    %33 = vector.load %arg5[%c0_15, %c0_16] : memref<120x84xf32, #tpu.memory_space<vmem>>, vector<120x84xf32>
    %cst_17 = arith.constant dense<0.000000e+00> : vector<2x84xf32>
    %34 = tpu.matmul %32, %33, %cst_17 {dimension_numbers = #tpu.dot_dimension_numbers<[1], [0], [0], [1], [0, 0, 1, 1], [], []>} : vector<2x120xf32>, vector<120x84xf32>, vector<2x84xf32> -> vector<2x84xf32>
    %c0_18 = arith.constant 0 : index
    %c0_19 = arith.constant 0 : index
    %35 = vector.load %arg6[%c0_18, %c0_19] : memref<1x84xf32, #tpu.memory_space<vmem>>, vector<1x84xf32>
    %36 = vector.broadcast %35 : vector<1x84xf32> to vector<2x84xf32>
    %37 = arith.addf %34, %36 : vector<2x84xf32>
    %cst_20 = arith.constant 1.000000e+00 : f32
    %38 = vector.broadcast %cst_20 : f32 to vector<2x84xf32>
    %39 = arith.cmpf oge, %37, %38 : vector<2x84xf32>
    %40 = arith.extui %39 : vector<2x84xi1> to vector<2x84xi32>
    %41 = arith.sitofp %40 : vector<2x84xi32> to vector<2x84xf32>
    %cst_21 = arith.constant dense<0.000000e+00> : vector<2xf32>
    %42 = vector.multi_reduction <add>, %41, %cst_21 [1] : vector<2x84xf32> to vector<2xf32>
    %43 = vector.shape_cast %42 : vector<2xf32> to vector<2x1xf32>
    %cst_22 = arith.constant 8.400000e+01 : f32
    %44 = vector.broadcast %cst_22 : f32 to vector<2x1xf32>
    %45 = arith.divf %43, %44 : vector<2x1xf32>
    %cst_23 = arith.constant dense<0.000000e+00> : vector<1xf32>
    %46 = vector.multi_reduction <add>, %45, %cst_23 [0] : vector<2x1xf32> to vector<1xf32>
    %47 = vector.shape_cast %46 : vector<1xf32> to vector<1x1xf32>
    %cst_24 = arith.constant 2.000000e+00 : f32
    %48 = vector.broadcast %cst_24 : f32 to vector<1x1xf32>
    %49 = arith.divf %47, %48 : vector<1x1xf32>
    %50 = arith.mulf %49, %49 : vector<1x1xf32>
    %51 = arith.subf %49, %50 : vector<1x1xf32>
    %cst_25 = arith.constant 9.99999974E-6 : f32
    %52 = vector.broadcast %cst_25 : f32 to vector<1x1xf32>
    %53 = arith.addf %51, %52 : vector<1x1xf32>
    %54 = math.rsqrt %53 : vector<1x1xf32>
    %55 = vector.broadcast %49 : vector<1x1xf32> to vector<2x84xf32>
    %56 = arith.subf %41, %55 : vector<2x84xf32>
    %c0_26 = arith.constant 0 : index
    %c0_27 = arith.constant 0 : index
    %57 = vector.load %arg7[%c0_26, %c0_27] : memref<1x1xf32, #tpu.memory_space<vmem>>, vector<1x1xf32>
    %58 = arith.mulf %54, %57 : vector<1x1xf32>
    %59 = vector.broadcast %58 : vector<1x1xf32> to vector<2x84xf32>
    %60 = arith.mulf %56, %59 : vector<2x84xf32>
    %c0_28 = arith.constant 0 : index
    %c0_29 = arith.constant 0 : index
    %61 = vector.load %arg8[%c0_28, %c0_29] : memref<1x1xf32, #tpu.memory_space<vmem>>, vector<1x1xf32>
    %62 = vector.broadcast %61 : vector<1x1xf32> to vector<2x84xf32>
    %63 = arith.addf %60, %62 : vector<2x84xf32>
    %c0_30 = arith.constant 0 : index
    %c0_31 = arith.constant 0 : index
    %64 = vector.load %arg9[%c0_30, %c0_31] : memref<84x10xf32, #tpu.memory_space<vmem>>, vector<84x10xf32>
    %cst_32 = arith.constant dense<0.000000e+00> : vector<2x10xf32>
    %65 = tpu.matmul %63, %64, %cst_32 {dimension_numbers = #tpu.dot_dimension_numbers<[1], [0], [0], [1], [0, 0, 1, 1], [], []>} : vector<2x84xf32>, vector<84x10xf32>, vector<2x10xf32> -> vector<2x10xf32>
    %c0_33 = arith.constant 0 : index
    %c0_34 = arith.constant 0 : index
    %66 = vector.load %arg10[%c0_33, %c0_34] : memref<1x10xf32, #tpu.memory_space<vmem>>, vector<1x10xf32>
    %67 = vector.broadcast %66 : vector<1x10xf32> to vector<2x10xf32>
    %68 = arith.addf %65, %67 : vector<2x10xf32>
    %cst_35 = arith.constant 1.000000e+00 : f32
    %69 = vector.broadcast %cst_35 : f32 to vector<2x10xf32>
    %70 = arith.cmpf oge, %68, %69 : vector<2x10xf32>
    %71 = arith.extui %70 : vector<2x10xi1> to vector<2x10xi32>
    %72 = arith.sitofp %71 : vector<2x10xi32> to vector<2x10xf32>
    %c0_36 = arith.constant 0 : index
    %c0_37 = arith.constant 0 : index
    %73 = vector.load %arg11[%c0_36, %c0_37] : memref<2x10xf32, #tpu.memory_space<vmem>>, vector<2x10xf32>
    tpu.vector_store %arg11[%c0_36, %c0_37], %72 {strides = array<i32>} : memref<2x10xf32, #tpu.memory_space<vmem>>, vector<2x10xf32>,
    return
  }
}

</mosaic_0001>

<llo_original>
// kernel: snn_lenet_forward.3
$region0: #{snn_lenet_forward.3}
  #allocation0 [shape = 'u32[]', space=smem, size = 0x4, offset = 0x4, fixed_abs, tag = 'smem constant byte address 0x4 - core index']
  #allocation1 [shape = 'u32[144,128]{1,0:T(1,128)}', space=vmem, size = 0x12000, scoped, tag = 'internal scratch']
  %s0 = inlined_call_operand.vmem [shape: f32[25,1568], index: 0, kind: input, shape index: {}]
  %s1 = inlined_call_operand.vmem [shape: f32[6,25], index: 1, kind: input, shape index: {}]
  %s2 = inlined_call_operand.vmem [shape: f32[6,1], index: 2, kind: input, shape index: {}]
  %s3 = inlined_call_operand.vmem [shape: bf16[6,1568], index: 3, kind: output, shape index: {}]
  %s4 = sld [smem:[#allocation0]]
  $region22: #{snn_lenet_forward.3} parent=0
    _
  %s6 = ssub.s32 1, %s4
  %s7 = scalar_select 0, %s6, %s4
  // Predicated region
  $region2: #{snn_lenet_forward.3} parent=0 // pred_check
    _
  $region3: #{snn_lenet_forward.3} parent=0 // pred_check_branch
    %9 = sbr.rel (0) target = $region5
  $region4: #{snn_lenet_forward.3} parent=0 // pred_region
    _
  $region5: #{snn_lenet_forward.3} parent=0 // pred_fallthru
    _
  // Predicated region
  $region6: #{snn_lenet_forward.3} parent=0 // pred_check
    _
  $region7: #{snn_lenet_forward.3} parent=0 // pred_check_branch
    %11 = sbr.rel (0) target = $region9
  $region8: #{snn_lenet_forward.3} parent=0 // pred_region
    _
  $region9: #{snn_lenet_forward.3} parent=0 // pred_fallthru
    _
  // Predicated region
  $region10: #{snn_lenet_forward.3} parent=0 // pred_check
    _
  $region11: #{snn_lenet_forward.3} parent=0 // pred_check_branch
    %13 = sbr.rel (0) target = $region13
  $region12: #{snn_lenet_forward.3} parent=0 // pred_region
    _
  $region13: #{snn_lenet_forward.3} parent=0 // pred_fallthru
    _
  %v14 = vld [vmem:[%s0] sm:$0xff]
  %v15 = vld [vmem:[%s0 + $0x8] sm:$0xff]
  %v16 = vld [vmem:[%s0 + $0x10] sm:$0xff]
  %v17 = vld [vmem:[%s0 + $0x18] sm:$0xff]
  %v18 = vld [vmem:[%s0 + $0x20] sm:$0xff]
  %v19 = vld [vmem:[%s0 + $0x28] sm:$0xff]
  %v20 = vld [vmem:[%s0 + $0x30] sm:$0xff]
  %v21 = vld [vmem:[%s0 + $0x38] sm:$0xff]
  %v22 = vld [vmem:[%s0 + $0x40] sm:$0xff]
  %v23 = vld [vmem:[%s0 + $0x48] sm:$0xff]
  %v24 = vld [vmem:[%s0 + $0x50] sm:$0xff]
  %v25 = vld [vmem:[%s0 + $0x58] sm:$0xff]
  %v26 = vld [vmem:[%s0 + $0x60] sm:$0xff]
  %v27 = vld [vmem:[%s0 + $0x68] sm:$0xff]
  %v28 = vld [vmem:[%s0 + $0x70] sm:$0xff]
  %v29 = vld [vmem:[%s0 + $0x78] sm:$0xff]
  %v30 = vld [vmem:[%s0 + $0x80] sm:$0xff]
  %v31 = vld [vmem:[%s0 + $0x88] sm:$0xff]
  %v32 = vld [vmem:[%s0 + $0x90] sm:$0xff]
  %v33 = vld [vmem:[%s0 + $0x98] sm:$0xff]
  %v34 = vld [vmem:[%s0 + $0xa0] sm:$0xff]
  %v35 = vld [vmem:[%s0 + $0xa8] sm:$0xff]
  %v36 = vld [vmem:[%s0 + $0xb0] sm:$0xff]
  %v37 = vld [vmem:[%s0 + $0xb8] sm:$0xff]
  %v38 = vld [vmem:[%s0 + $0xc0] sm:$0xff]
  %v39 = vld [vmem:[%s0 + $0xc8] sm:$0xff]
  %v40 = vld [vmem:[%s0 + $0xd0] sm:$0xff]
  %v41 = vld [vmem:[%s0 + $0xd8] sm:$0xff]
  %v42 = vld [vmem:[%s0 + $0xe0] sm:$0xff]
  %v43 = vld [vmem:[%s0 + $0xe8] sm:$0xff]
  %v44 = vld [vmem:[%s0 + $0xf0] sm:$0xff]
  %v45 = vld [vmem:[%s0 + $0xf8] sm:$0xff]
  %v46 = vld [vmem:[%s0 + $0x100] sm:$0xff]
  %v47 = vld [vmem:[%s0 + $0x108] sm:$0xff]
  %v48 = vld [vmem:[%s0 + $0x110] sm:$0xff]
  %v49 = vld [vmem:[%s0 + $0x118] sm:$0xff]
  %v50 = vld [vmem:[%s0 + $0x120] sm:$0xff]
  %v51 = vld [vmem:[%s0 + $0x128] sm:$0xff]
  %v52 = vld [vmem:[%s0 + $0x130] sm:$0xff]
  %v53 = vld [vmem:[%s0 + $0x138] sm:$0x1]
  %v54 = vld [vmem:[%s0 + $0x140] sm:$0x1]
  %v55 = vld [vmem:[%s0 + $0x148] sm:$0x1]
  %v56 = vld [vmem:[%s0 + $0x150] sm:$0x1]
  %v57 = vld [vmem:[%s0 + $0x158] sm:$0x1]
  %v58 = vld [vmem:[%s0 + $0x160] sm:$0x1]
  %v59 = vld [vmem:[%s0 + $0x168] sm:$0x1]
  %v60 = vld [vmem:[%s0 + $0x170] sm:$0x1]
  %v61 = vld [vmem:[%s0 + $0x178] sm:$0x1]
  %v62 = vld [vmem:[%s0 + $0x180] sm:$0x1]
  %v63 = vld [vmem:[%s0 + $0x188] sm:$0x1]
  %v64 = vld [vmem:[%s0 + $0x190] sm:$0x1]
  %v65 = vld [vmem:[%s0 + $0x198] sm:$0x1]
  %v66 = vld [vmem:[%s1] sm:$0x3f]
  %v67 = vld [vmem:[%s2] sm:$0x3f]
  %69 = vset.pattern.permute.xlu0 0
  %70 = vperm.xlu0 %69, %v67
  %v71 = vpop.permute.xlu0 %70
  %vm73 = vcmask 203776
  %v75 = vsel %vm73, %v66, 0
  %vm77 = vcmask 1040384
  %v79 = vsel %vm77, %v53, 0
  %v82 = vsel %vm77, %v54, 0
  %v85 = vsel %vm77, %v55, 0
  %v88 = vsel %vm77, %v56, 0
  %v91 = vsel %vm77, %v57, 0
  %v94 = vsel %vm77, %v58, 0
  %v97 = vsel %vm77, %v59, 0
  %v100 = vsel %vm77, %v60, 0
  %v103 = vsel %vm77, %v61, 0
  %v106 = vsel %vm77, %v62, 0
  %v109 = vsel %vm77, %v63, 0
  %v112 = vsel %vm77, %v64, 0
  %v115 = vsel %vm77, %v65, 0
  %117 = vmatprep.subr.mxu0 0.0
  %118 = vmatpush1.msra.mxu0 0.0
  %119 = vmatprep.subr.mxu0 0.0
  %120 = vmatpush1.msra.mxu0 0.0
  %121 = vmatprep.subr.mxu0 0.0
  %122 = vmatpush1.msra.mxu0 0.0
  %123 = vmatprep.subr.mxu0 0.0
  %124 = vmatpush1.msra.mxu0 0.0
  %125 = vmatprep.subr.mxu0 0.0
  %126 = vmatpush1.msra.mxu0 0.0
  %127 = vmatprep.subr.mxu0 0.0
  %128 = vmatpush1.msra.mxu0 0.0
  %129 = vmatprep.subr.mxu0 0.0
  %130 = vmatpush1.msra.mxu0 0.0
  %131 = vmatprep.subr.mxu0 0.0
  %132 = vmatpush1.msra.mxu0 0.0
  %133 = vmatprep.subr.mxu0 0.0
  %134 = vmatpush1.msra.mxu0 0.0
  %135 = vmatprep.subr.mxu0 0.0
  %136 = vmatpush1.msra.mxu0 0.0
  %137 = vmatprep.subr.mxu0 0.0
  %138 = vmatpush1.msra.mxu0 0.0
  %139 = vmatprep.subr.mxu0 0.0
  %140 = vmatpush1.msra.mxu0 0.0
  %141 = vmatprep.subr.mxu0 %v82
  %142 = vmatpush1.msra.mxu0 %v79
  %143 = vmatprep.subr.mxu0 %v41
  %144 = vmatpush1.msra.mxu0 %v40
  %145 = vmatprep.subr.mxu0 %v28
  %146 = vmatpush1.msra.mxu0 %v27
  %147 = vmatprep.subr.mxu0 %v15
  %148 = vmatpush1.msra.mxu0 %v14
  %149 = vmatprep.subr.mxu0 0.0
  %150 = vmatpush2.msra.mxu0 0.0
  %151 = vmatprep.subr.mxu0 0.0
  %152 = vmatpush2.msra.mxu0 0.0
  %153 = vmatprep.subr.mxu0 0.0
  %154 = vmatpush2.msra.mxu0 0.0
  %155 = vmatprep.subr.mxu0 0.0
  %156 = vmatpush2.msra.mxu0 0.0
  %157 = vmatprep.subr.mxu0 0.0
  %158 = vmatpush2.msra.mxu0 0.0
  %159 = vmatprep.subr.mxu0 0.0
  %160 = vmatpush2.msra.mxu0 0.0
  %161 = vmatprep.subr.mxu0 0.0
  %162 = vmatpush2.msra.mxu0 0.0
  %163 = vmatprep.subr.mxu0 0.0
  %164 = vmatpush2.msra.mxu0 0.0
  %165 = vmatprep.subr.mxu0 0.0
  %166 = vmatpush2.msra.mxu0 0.0
  %167 = vmatprep.subr.mxu0 0.0
  %168 = vmatpush2.msra.mxu0 0.0
  %169 = vmatprep.subr.mxu0 0.0
  %170 = vmatpush2.msra.mxu0 0.0
  %171 = vmatprep.subr.mxu0 0.0
  %172 = vmatpush2.msra.mxu0 0.0
  %173 = vmatprep.subr.mxu0 0.0
  %174 = vmatpush2.msra.mxu0 0.0
  %175 = vmatprep.subr.mxu0 0.0
  %176 = vmatpush2.msra.mxu0 0.0
  %177 = vmatprep.subr.mxu0 0.0
  %178 = vmatpush2.msra.mxu0 0.0
  %179 = vmatprep.subr.mxu0 0.0
  %180 = vmatpush2.msra.mxu0 0.0
  %181 = vmatprep.mubr.f32.mxu0 0.0
  %182 = vmatmul.mubr.f32.gmra.mxu0 %v75
  %v183 = vpop.f32.mrf.mxu0
  %v184 = vadd.f32 %v71, %v183
  %v185 = vpop.f32.mrf.mxu0
  %v186 = vadd.f32 %v71, %v185
  %187 = vdwg.mxu0
  %188 = vmatprep.subr.mxu0 0.0
  %189 = vmatpush1.msra.mxu0 0.0
  %190 = vmatprep.subr.mxu0 0.0
  %191 = vmatpush1.msra.mxu0 0.0
  %192 = vmatprep.subr.mxu0 0.0
  %193 = vmatpush1.msra.mxu0 0.0
  %194 = vmatprep.subr.mxu0 0.0
  %195 = vmatpush1.msra.mxu0 0.0
  %196 = vmatprep.subr.mxu0 0.0
  %197 = vmatpush1.msra.mxu0 0.0
  %198 = vmatprep.subr.mxu0 0.0
  %199 = vmatpush1.msra.mxu0 0.0
  %200 = vmatprep.subr.mxu0 0.0
  %201 = vmatpush1.msra.mxu0 0.0
  %202 = vmatprep.subr.mxu0 0.0
  %203 = vmatpush1.msra.mxu0 0.0
  %204 = vmatprep.subr.mxu0 0.0
  %205 = vmatpush1.msra.mxu0 0.0
  %206 = vmatprep.subr.mxu0 0.0
  %207 = vmatpush1.msra.mxu0 0.0
  %208 = vmatprep.subr.mxu0 0.0
  %209 = vmatpush1.msra.mxu0 0.0
  %210 = vmatprep.subr.mxu0 0.0
  %211 = vmatpush1.msra.mxu0 0.0
  %212 = vmatprep.subr.mxu0 %v88
  %213 = vmatpush1.msra.mxu0 %v85
  %214 = vmatprep.subr.mxu0 %v43
  %215 = vmatpush1.msra.mxu0 %v42
  %216 = vmatprep.subr.mxu0 %v30
  %217 = vmatpush1.msra.mxu0 %v29
  %218 = vmatprep.subr.mxu0 %v17
  %219 = vmatpush1.msra.mxu0 %v16
  %220 = vmatprep.subr.mxu0 0.0
  %221 = vmatpush2.msra.mxu0 0.0
  %222 = vmatprep.subr.mxu0 0.0
  %223 = vmatpush2.msra.mxu0 0.0
  %224 = vmatprep.subr.mxu0 0.0
  %225 = vmatpush2.msra.mxu0 0.0
  %226 = vmatprep.subr.mxu0 0.0
  %227 = vmatpush2.msra.mxu0 0.0
  %228 = vmatprep.subr.mxu0 0.0
  %229 = vmatpush2.msra.mxu0 0.0
  %230 = vmatprep.subr.mxu0 0.0
  %231 = vmatpush2.msra.mxu0 0.0
  %232 = vmatprep.subr.mxu0 0.0
  %233 = vmatpush2.msra.mxu0 0.0
  %234 = vmatprep.subr.mxu0 0.0
  %235 = vmatpush2.msra.mxu0 0.0
  %236 = vmatprep.subr.mxu0 0.0
  %237 = vmatpush2.msra.mxu0 0.0
  %238 = vmatprep.subr.mxu0 0.0
  %239 = vmatpush2.msra.mxu0 0.0
  %240 = vmatprep.subr.mxu0 0.0
  %241 = vmatpush2.msra.mxu0 0.0
  %242 = vmatprep.subr.mxu0 0.0
  %243 = vmatpush2.msra.mxu0 0.0
  %244 = vmatprep.subr.mxu0 0.0
  %245 = vmatpush2.msra.mxu0 0.0
  %246 = vmatprep.subr.mxu0 0.0
  %247 = vmatpush2.msra.mxu0 0.0
  %248 = vmatprep.subr.mxu0 0.0
  %249 = vmatpush2.msra.mxu0 0.0
  %250 = vmatprep.subr.mxu0 0.0
  %251 = vmatpush2.msra.mxu0 0.0
  %252 = vmatprep.mubr.f32.mxu0 0.0
  %253 = vmatmul.mubr.f32.gmra.mxu0 %v75
  %v254 = vpop.f32.mrf.mxu0
  %v255 = vadd.f32 %v71, %v254
  %v256 = vpop.f32.mrf.mxu0
  %v257 = vadd.f32 %v71, %v256
  %258 = vdwg.mxu0
  %259 = vmatprep.subr.mxu0 0.0
  %260 = vmatpush1.msra.mxu0 0.0
  %261 = vmatprep.subr.mxu0 0.0
  %262 = vmatpush1.msra.mxu0 0.0
  %263 = vmatprep.subr.mxu0 0.0
  %264 = vmatpush1.msra.mxu0 0.0
  %265 = vmatprep.subr.mxu0 0.0
  %266 = vmatpush1.msra.mxu0 0.0
  %267 = vmatprep.subr.mxu0 0.0
  %268 = vmatpush1.msra.mxu0 0.0
  %269 = vmatprep.subr.mxu0 0.0
  %270 = vmatpush1.msra.mxu0 0.0
  %271 = vmatprep.subr.mxu0 0.0
  %272 = vmatpush1.msra.mxu0 0.0
  %273 = vmatprep.subr.mxu0 0.0
  %274 = vmatpush1.msra.mxu0 0.0
  %275 = vmatprep.subr.mxu0 0.0
  %276 = vmatpush1.msra.mxu0 0.0
  %277 = vmatprep.subr.mxu0 0.0
  %278 = vmatpush1.msra.mxu0 0.0
  %279 = vmatprep.subr.mxu0 0.0
  %280 = vmatpush1.msra.mxu0 0.0
  %281 = vmatprep.subr.mxu0 0.0
  %282 = vmatpush1.msra.mxu0 0.0
  %283 = vmatprep.subr.mxu0 %v94
  %284 = vmatpush1.msra.mxu0 %v91
  %285 = vmatprep.subr.mxu0 %v45
  %286 = vmatpush1.msra.mxu0 %v44
  %287 = vmatprep.subr.mxu0 %v32
  %288 = vmatpush1.msra.mxu0 %v31
  %289 = vmatprep.subr.mxu0 %v19
  %290 = vmatpush1.msra.mxu0 %v18
  %291 = vmatprep.subr.mxu0 0.0
  %292 = vmatpush2.msra.mxu0 0.0
  %293 = vmatprep.subr.mxu0 0.0
  %294 = vmatpush2.msra.mxu0 0.0
  %295 = vmatprep.subr.mxu0 0.0
  %296 = vmatpush2.msra.mxu0 0.0
  %297 = vmatprep.subr.mxu0 0.0
  %298 = vmatpush2.msra.mxu0 0.0
  %299 = vmatprep.subr.mxu0 0.0
  %300 = vmatpush2.msra.mxu0 0.0
  %301 = vmatprep.subr.mxu0 0.0
  %302 = vmatpush2.msra.mxu0 0.0
  %303 = vmatprep.subr.mxu0 0.0
  %304 = vmatpush2.msra.mxu0 0.0
  %305 = vmatprep.subr.mxu0 0.0
  %306 = vmatpush2.msra.mxu0 0.0
  %307 = vmatprep.subr.mxu0 0.0
  %308 = vmatpush2.msra.mxu0 0.0
  %309 = vmatprep.subr.mxu0 0.0
  %310 = vmatpush2.msra.mxu0 0.0
  %311 = vmatprep.subr.mxu0 0.0
  %312 = vmatpush2.msra.mxu0 0.0
  %313 = vmatprep.subr.mxu0 0.0
  %314 = vmatpush2.msra.mxu0 0.0
  %315 = vmatprep.subr.mxu0 0.0
  %316 = vmatpush2.msra.mxu0 0.0
  %317 = vmatprep.subr.mxu0 0.0
  %318 = vmatpush2.msra.mxu0 0.0
  %319 = vmatprep.subr.mxu0 0.0
  %320 = vmatpush2.msra.mxu0 0.0
  %321 = vmatprep.subr.mxu0 0.0
  %322 = vmatpush2.msra.mxu0 0.0
  %323 = vmatprep.mubr.f32.mxu0 0.0
  %324 = vmatmul.mubr.f32.gmra.mxu0 %v75
  %v325 = vpop.f32.mrf.mxu0
  %v326 = vadd.f32 %v71, %v325
  %v327 = vpop.f32.mrf.mxu0
  %v328 = vadd.f32 %v71, %v327
  %329 = vdwg.mxu0
  %330 = vmatprep.subr.mxu0 0.0
  %331 = vmatpush1.msra.mxu0 0.0
  %332 = vmatprep.subr.mxu0 0.0
  %333 = vmatpush1.msra.mxu0 0.0
  %334 = vmatprep.subr.mxu0 0.0
  %335 = vmatpush1.msra.mxu0 0.0
  %336 = vmatprep.subr.mxu0 0.0
  %337 = vmatpush1.msra.mxu0 0.0
  %338 = vmatprep.subr.mxu0 0.0
  %339 = vmatpush1.msra.mxu0 0.0
  %340 = vmatprep.subr.mxu0 0.0
  %341 = vmatpush1.msra.mxu0 0.0
  %342 = vmatprep.subr.mxu0 0.0
  %343 = vmatpush1.msra.mxu0 0.0
  %344 = vmatprep.subr.mxu0 0.0
  %345 = vmatpush1.msra.mxu0 0.0
  %346 = vmatprep.subr.mxu0 0.0
  %347 = vmatpush1.msra.mxu0 0.0
  %348 = vmatprep.subr.mxu0 0.0
  %349 = vmatpush1.msra.mxu0 0.0
  %350 = vmatprep.subr.mxu0 0.0
  %351 = vmatpush1.msra.mxu0 0.0
  %352 = vmatprep.subr.mxu0 0.0
  %353 = vmatpush1.msra.mxu0 0.0
  %354 = vmatprep.subr.mxu0 %v100
  %355 = vmatpush1.msra.mxu0 %v97
  %356 = vmatprep.subr.mxu0 %v47
  %357 = vmatpush1.msra.mxu0 %v46
  %358 = vmatprep.subr.mxu0 %v34
  %359 = vmatpush1.msra.mxu0 %v33
  %360 = vmatprep.subr.mxu0 %v21
  %361 = vmatpush1.msra.mxu0 %v20
  %362 = vmatprep.subr.mxu0 0.0
  %363 = vmatpush2.msra.mxu0 0.0
  %364 = vmatprep.subr.mxu0 0.0
  %365 = vmatpush2.msra.mxu0 0.0
  %366 = vmatprep.subr.mxu0 0.0
  %367 = vmatpush2.msra.mxu0 0.0
  %368 = vmatprep.subr.mxu0 0.0
  %369 = vmatpush2.msra.mxu0 0.0
  %370 = vmatprep.subr.mxu0 0.0
  %371 = vmatpush2.msra.mxu0 0.0
  %372 = vmatprep.subr.mxu0 0.0
  %373 = vmatpush2.msra.mxu0 0.0
  %374 = vmatprep.subr.mxu0 0.0
  %375 = vmatpush2.msra.mxu0 0.0
  %376 = vmatprep.subr.mxu0 0.0
  %377 = vmatpush2.msra.mxu0 0.0
  %378 = vmatprep.subr.mxu0 0.0
  %379 = vmatpush2.msra.mxu0 0.0
  %380 = vmatprep.subr.mxu0 0.0
  %381 = vmatpush2.msra.mxu0 0.0
  %382 = vmatprep.subr.mxu0 0.0
  %383 = vmatpush2.msra.mxu0 0.0
  %384 = vmatprep.subr.mxu0 0.0
  %385 = vmatpush2.msra.mxu0 0.0
  %386 = vmatprep.subr.mxu0 0.0
  %387 = vmatpush2.msra.mxu0 0.0
  %388 = vmatprep.subr.mxu0 0.0
  %389 = vmatpush2.msra.mxu0 0.0
  %390 = vmatprep.subr.mxu0 0.0
  %391 = vmatpush2.msra.mxu0 0.0
  %392 = vmatprep.subr.mxu0 0.0
  %393 = vmatpush2.msra.mxu0 0.0
  %394 = vmatprep.mubr.f32.mxu0 0.0
  %395 = vmatmul.mubr.f32.gmra.mxu0 %v75
  %v396 = vpop.f32.mrf.mxu0
  %v397 = vadd.f32 %v71, %v396
  %v398 = vpop.f32.mrf.mxu0
  %v399 = vadd.f32 %v71, %v398
  %400 = vdwg.mxu0
  %401 = vmatprep.subr.mxu0 0.0
  %402 = vmatpush1.msra.mxu0 0.0
  %403 = vmatprep.subr.mxu0 0.0
  %404 = vmatpush1.msra.mxu0 0.0
  %405 = vmatprep.subr.mxu0 0.0
  %406 = vmatpush1.msra.mxu0 0.0
  %407 = vmatprep.subr.mxu0 0.0
  %408 = vmatpush1.msra.mxu0 0.0
  %409 = vmatprep.subr.mxu0 0.0
  %410 = vmatpush1.msra.mxu0 0.0
  %411 = vmatprep.subr.mxu0 0.0
  %412 = vmatpush1.msra.mxu0 0.0
  %413 = vmatprep.subr.mxu0 0.0
  %414 = vmatpush1.msra.mxu0 0.0
  %415 = vmatprep.subr.mxu0 0.0
  %416 = vmatpush1.msra.mxu0 0.0
  %417 = vmatprep.subr.mxu0 0.0
  %418 = vmatpush1.msra.mxu0 0.0
  %419 = vmatprep.subr.mxu0 0.0
  %420 = vmatpush1.msra.mxu0 0.0
  %421 = vmatprep.subr.mxu0 0.0
  %422 = vmatpush1.msra.mxu0 0.0
  %423 = vmatprep.subr.mxu0 0.0
  %424 = vmatpush1.msra.mxu0 0.0
  %425 = vmatprep.subr.mxu0 %v106
  %426 = vmatpush1.msra.mxu0 %v103
  %427 = vmatprep.subr.mxu0 %v49
  %428 = vmatpush1.msra.mxu0 %v48
  %429 = vmatprep.subr.mxu0 %v36
  %430 = vmatpush1.msra.mxu0 %v35
  %431 = vmatprep.subr.mxu0 %v23
  %432 = vmatpush1.msra.mxu0 %v22
  %433 = vmatprep.subr.mxu0 0.0
  %434 = vmatpush2.msra.mxu0 0.0
  %435 = vmatprep.subr.mxu0 0.0
  %436 = vmatpush2.msra.mxu0 0.0
  %437 = vmatprep.subr.mxu0 0.0
  %438 = vmatpush2.msra.mxu0 0.0
  %439 = vmatprep.subr.mxu0 0.0
  %440 = vmatpush2.msra.mxu0 0.0
  %441 = vmatprep.subr.mxu0 0.0
  %442 = vmatpush2.msra.mxu0 0.0
  %443 = vmatprep.subr.mxu0 0.0
  %444 = vmatpush2.msra.mxu0 0.0
  %445 = vmatprep.subr.mxu0 0.0
  %446 = vmatpush2.msra.mxu0 0.0
  %447 = vmatprep.subr.mxu0 0.0
  %448 = vmatpush2.msra.mxu0 0.0
  %449 = vmatprep.subr.mxu0 0.0
  %450 = vmatpush2.msra.mxu0 0.0
  %451 = vmatprep.subr.mxu0 0.0
  %452 = vmatpush2.msra.mxu0 0.0
  %453 = vmatprep.subr.mxu0 0.0
  %454 = vmatpush2.msra.mxu0 0.0
  %455 = vmatprep.subr.mxu0 0.0
  %456 = vmatpush2.msra.mxu0 0.0
  %457 = vmatprep.subr.mxu0 0.0
  %458 = vmatpush2.msra.mxu0 0.0
  %459 = vmatprep.subr.mxu0 0.0
  %460 = vmatpush2.msra.mxu0 0.0
  %461 = vmatprep.subr.mxu0 0.0
  %462 = vmatpush2.msra.mxu0 0.0
  %463 = vmatprep.subr.mxu0 0.0
  %464 = vmatpush2.msra.mxu0 0.0
  %465 = vmatprep.mubr.f32.mxu0 0.0
  %466 = vmatmul.mubr.f32.gmra.mxu0 %v75
  %v467 = vpop.f32.mrf.mxu0
  %v468 = vadd.f32 %v71, %v467
  %v469 = vpop.f32.mrf.mxu0
  %v470 = vadd.f32 %v71, %v469
  %471 = vdwg.mxu0
  %472 = vmatprep.subr.mxu0 0.0
  %473 = vmatpush1.msra.mxu0 0.0
  %474 = vmatprep.subr.mxu0 0.0
  %475 = vmatpush1.msra.mxu0 0.0
  %476 = vmatprep.subr.mxu0 0.0
  %477 = vmatpush1.msra.mxu0 0.0
  %478 = vmatprep.subr.mxu0 0.0
  %479 = vmatpush1.msra.mxu0 0.0
  %480 = vmatprep.subr.mxu0 0.0
  %481 = vmatpush1.msra.mxu0 0.0
  %482 = vmatprep.subr.mxu0 0.0
  %483 = vmatpush1.msra.mxu0 0.0
  %484 = vmatprep.subr.mxu0 0.0
  %485 = vmatpush1.msra.mxu0 0.0
  %486 = vmatprep.subr.mxu0 0.0
  %487 = vmatpush1.msra.mxu0 0.0
  %488 = vmatprep.subr.mxu0 0.0
  %489 = vmatpush1.msra.mxu0 0.0
  %490 = vmatprep.subr.mxu0 0.0
  %491 = vmatpush1.msra.mxu0 0.0
  %492 = vmatprep.subr.mxu0 0.0
  %493 = vmatpush1.msra.mxu0 0.0
  %494 = vmatprep.subr.mxu0 0.0
  %495 = vmatpush1.msra.mxu0 0.0
  %496 = vmatprep.subr.mxu0 %v112
  %497 = vmatpush1.msra.mxu0 %v109
  %498 = vmatprep.subr.mxu0 %v51
  %499 = vmatpush1.msra.mxu0 %v50
  %500 = vmatprep.subr.mxu0 %v38
  %501 = vmatpush1.msra.mxu0 %v37
  %502 = vmatprep.subr.mxu0 %v25
  %503 = vmatpush1.msra.mxu0 %v24
  %504 = vmatprep.subr.mxu0 0.0
  %505 = vmatpush2.msra.mxu0 0.0
  %506 = vmatprep.subr.mxu0 0.0
  %507 = vmatpush2.msra.mxu0 0.0
  %508 = vmatprep.subr.mxu0 0.0
  %509 = vmatpush2.msra.mxu0 0.0
  %510 = vmatprep.subr.mxu0 0.0
  %511 = vmatpush2.msra.mxu0 0.0
  %512 = vmatprep.subr.mxu0 0.0
  %513 = vmatpush2.msra.mxu0 0.0
  %514 = vmatprep.subr.mxu0 0.0
  %515 = vmatpush2.msra.mxu0 0.0
  %516 = vmatprep.subr.mxu0 0.0
  %517 = vmatpush2.msra.mxu0 0.0
  %518 = vmatprep.subr.mxu0 0.0
  %519 = vmatpush2.msra.mxu0 0.0
  %520 = vmatprep.subr.mxu0 0.0
  %521 = vmatpush2.msra.mxu0 0.0
  %522 = vmatprep.subr.mxu0 0.0
  %523 = vmatpush2.msra.mxu0 0.0
  %524 = vmatprep.subr.mxu0 0.0
  %525 = vmatpush2.msra.mxu0 0.0
  %526 = vmatprep.subr.mxu0 0.0
  %527 = vmatpush2.msra.mxu0 0.0
  %528 = vmatprep.subr.mxu0 0.0
  %529 = vmatpush2.msra.mxu0 0.0
  %530 = vmatprep.subr.mxu0 0.0
  %531 = vmatpush2.msra.mxu0 0.0
  %532 = vmatprep.subr.mxu0 0.0
  %533 = vmatpush2.msra.mxu0 0.0
  %534 = vmatprep.subr.mxu0 0.0
  %535 = vmatpush2.msra.mxu0 0.0
  %536 = vmatprep.mubr.f32.mxu0 0.0
  %537 = vmatmul.mubr.f32.gmra.mxu0 %v75
  %v538 = vpop.f32.mrf.mxu0
  %v539 = vadd.f32 %v71, %v538
  %v540 = vpop.f32.mrf.mxu0
  %v541 = vadd.f32 %v71, %v540
  %542 = vdwg.mxu0
  %543 = vmatprep.subr.mxu0 0.0
  %544 = vmatpush1.msra.mxu0 0.0
  %545 = vmatprep.subr.mxu0 0.0
  %546 = vmatpush1.msra.mxu0 0.0
  %547 = vmatprep.subr.mxu0 0.0
  %548 = vmatpush1.msra.mxu0 0.0
  %549 = vmatprep.subr.mxu0 0.0
  %550 = vmatpush1.msra.mxu0 0.0
  %551 = vmatprep.subr.mxu0 0.0
  %552 = vmatpush1.msra.mxu0 0.0
  %553 = vmatprep.subr.mxu0 0.0
  %554 = vmatpush1.msra.mxu0 0.0
  %555 = vmatprep.subr.mxu0 0.0
  %556 = vmatpush1.msra.mxu0 0.0
  %557 = vmatprep.subr.mxu0 0.0
  %558 = vmatpush1.msra.mxu0 0.0
  %559 = vmatprep.subr.mxu0 0.0
  %560 = vmatpush1.msra.mxu0 0.0
  %561 = vmatprep.subr.mxu0 0.0
  %562 = vmatpush1.msra.mxu0 0.0
  %563 = vmatprep.subr.mxu0 0.0
  %564 = vmatpush1.msra.mxu0 0.0
  %565 = vmatprep.subr.mxu0 0.0
  %566 = vmatpush1.msra.mxu0 0.0
  %567 = vmatprep.subr.mxu0 0.0
  %568 = vmatpush1.msra.mxu0 %v115
  %569 = vmatprep.subr.mxu0 0.0
  %570 = vmatpush1.msra.mxu0 %v52
  %571 = vmatprep.subr.mxu0 0.0
  %572 = vmatpush1.msra.mxu0 %v39
  %573 = vmatprep.subr.mxu0 0.0
  %574 = vmatpush1.msra.mxu0 %v26
  %575 = vmatprep.subr.mxu0 0.0
  %576 = vmatpush2.msra.mxu0 0.0
  %577 = vmatprep.subr.mxu0 0.0
  %578 = vmatpush2.msra.mxu0 0.0
  %579 = vmatprep.subr.mxu0 0.0
  %580 = vmatpush2.msra.mxu0 0.0
  %581 = vmatprep.subr.mxu0 0.0
  %582 = vmatpush2.msra.mxu0 0.0
  %583 = vmatprep.subr.mxu0 0.0
  %584 = vmatpush2.msra.mxu0 0.0
  %585 = vmatprep.subr.mxu0 0.0
  %586 = vmatpush2.msra.mxu0 0.0
  %587 = vmatprep.subr.mxu0 0.0
  %588 = vmatpush2.msra.mxu0 0.0
  %589 = vmatprep.subr.mxu0 0.0
  %590 = vmatpush2.msra.mxu0 0.0
  %591 = vmatprep.subr.mxu0 0.0
  %592 = vmatpush2.msra.mxu0 0.0
  %593 = vmatprep.subr.mxu0 0.0
  %594 = vmatpush2.msra.mxu0 0.0
  %595 = vmatprep.subr.mxu0 0.0
  %596 = vmatpush2.msra.mxu0 0.0
  %597 = vmatprep.subr.mxu0 0.0
  %598 = vmatpush2.msra.mxu0 0.0
  %599 = vmatprep.subr.mxu0 0.0
  %600 = vmatpush2.msra.mxu0 0.0
  %601 = vmatprep.subr.mxu0 0.0
  %602 = vmatpush2.msra.mxu0 0.0
  %603 = vmatprep.subr.mxu0 0.0
  %604 = vmatpush2.msra.mxu0 0.0
  %605 = vmatprep.subr.mxu0 0.0
  %606 = vmatpush2.msra.mxu0 0.0
  %607 = vmatprep.mubr.f32.mxu0 0.0
  %608 = vmatmul.mubr.f32.gmra.mxu0 %v75
  %v609 = vpop.f32.mrf.mxu0
  %v610 = vadd.f32 %v71, %v609
  %v611 = vpop.f32.mrf.mxu0
  %612 = vdwg.mxu0
  %vm613 = vcmp.ge.f32.partialorder %v184, 1.0
  %vm614 = vcmp.ge.f32.partialorder %v186, 1.0
  %vm615 = vcmp.ge.f32.partialorder %v255, 1.0
  %vm616 = vcmp.ge.f32.partialorder %v257, 1.0
  %vm617 = vcmp.ge.f32.partialorder %v326, 1.0
  %vm618 = vcmp.ge.f32.partialorder %v328, 1.0
  %vm619 = vcmp.ge.f32.partialorder %v397, 1.0
  %vm620 = vcmp.ge.f32.partialorder %v399, 1.0
  %vm621 = vcmp.ge.f32.partialorder %v468, 1.0
  %vm622 = vcmp.ge.f32.partialorder %v470, 1.0
  %vm623 = vcmp.ge.f32.partialorder %v539, 1.0
  %vm624 = vcmp.ge.f32.partialorder %v541, 1.0
  %vm625 = vcmp.ge.f32.partialorder %v610, 1.0
  %v626 = vsel %vm613, 1, 0
  %v627 = vsel %vm614, 1, 0
  %v628 = vsel %vm615, 1, 0
  %v629 = vsel %vm616, 1, 0
  %v630 = vsel %vm617, 1, 0
  %v631 = vsel %vm618, 1, 0
  %v632 = vsel %vm619, 1, 0
  %v633 = vsel %vm620, 1, 0
  %v634 = vsel %vm621, 1, 0
  %v635 = vsel %vm622, 1, 0
  %v636 = vsel %vm623, 1, 0
  %v637 = vsel %vm624, 1, 0
  %v638 = vsel %vm625, 1, 0
  %v639 = vcvt.s32.f32 %v626
  %v640 = vcvt.s32.f32 %v627
  %v641 = vcvt.s32.f32 %v628
  %v642 = vcvt.s32.f32 %v629
  %v643 = vcvt.s32.f32 %v630
  %v644 = vcvt.s32.f32 %v631
  %v645 = vcvt.s32.f32 %v632
  %v646 = vcvt.s32.f32 %v633
  %v647 = vcvt.s32.f32 %v634
  %v648 = vcvt.s32.f32 %v635
  %v649 = vcvt.s32.f32 %v636
  %v650 = vcvt.s32.f32 %v637
  %v651 = vcvt.s32.f32 %v638
  %v652 = vpack.c.bf16 %v639, %v639
  %v653 = vpack.c.bf16 %v640, %v640
  %v654 = vpack.c.bf16 %v641, %v641
  %v655 = vpack.c.bf16 %v642, %v642
  %v656 = vpack.c.bf16 %v643, %v643
  %v657 = vpack.c.bf16 %v644, %v644
  %v658 = vpack.c.bf16 %v645, %v645
  %v659 = vpack.c.bf16 %v646, %v646
  %v660 = vpack.c.bf16 %v647, %v647
  %v661 = vpack.c.bf16 %v648, %v648
  %v662 = vpack.c.bf16 %v649, %v649
  %v663 = vpack.c.bf16 %v650, %v650
  %v664 = vpack.c.bf16 %v651, %v651
  %v678 = vunpack.c.l.b16 %v652
  %v679 = vunpack.c.l.b16 %v653
  %v680 = vunpack.c.l.b16 %v654
  %v681 = vunpack.c.l.b16 %v655
  %v682 = vunpack.c.l.b16 %v656
  %v683 = vunpack.c.l.b16 %v657
  %v684 = vunpack.c.l.b16 %v658
  %v685 = vunpack.c.l.b16 %v659
  %v686 = vunpack.c.l.b16 %v660
  %v687 = vunpack.c.l.b16 %v661
  %v688 = vunpack.c.l.b16 %v662
  %v689 = vunpack.c.l.b16 %v663
  %v690 = vunpack.c.l.b16 %v664
  %v691 = vpack.c.b16 %v679, %v678
  %v692 = vpack.c.b16 %v681, %v680
  %v693 = vpack.c.b16 %v683, %v682
  %v694 = vpack.c.b16 %v685, %v684
  %v695 = vpack.c.b16 %v687, %v686
  %v696 = vpack.c.b16 %v689, %v688
  %v697 = vpack.c.b16 %v690, %v690
  %705 = vst [vmem:[%s3] sm:$0x77] %v691
  %706 = vst [vmem:[%s3 + $0x8] sm:$0x77] %v692
  %707 = vst [vmem:[%s3 + $0x10] sm:$0x77] %v693
  %708 = vst [vmem:[%s3 + $0x18] sm:$0x77] %v694
  %709 = vst [vmem:[%s3 + $0x20] sm:$0x77] %v695
  %710 = vst [vmem:[%s3 + $0x28] sm:$0x77] %v696
  %vm711 = vcmask 256000
  %712 = vst.msk [vmem:[%s3 + $0x30] sm:$0x7] %vm711, %v697
  // Predicated region
  $region14: #{snn_lenet_forward.3} parent=0 // pred_check
    _
  $region15: #{snn_lenet_forward.3} parent=0 // pred_check_branch
    %714 = sbr.rel (0) target = $region17
  $region16: #{snn_lenet_forward.3} parent=0 // pred_region
    _
  $region17: #{snn_lenet_forward.3} parent=0 // pred_fallthru
    _
  // Predicated region
  $region18: #{snn_lenet_forward.3} parent=0 // pred_check
    _
  $region19: #{snn_lenet_forward.3} parent=0 // pred_check_branch
    %716 = sbr.rel (0) target = $region21
  $region20: #{snn_lenet_forward.3} parent=0 // pred_region
    _
  $region21: #{snn_lenet_forward.3} parent=0 // pred_fallthru
    _

// kernel: mul.18
$region0: #{mul.18}
  %s0 = inlined_call_operand.vmem [shape: f32[6,25], index: 0, kind: input, shape index: {}]
  %s1 = inlined_call_operand.vmem [shape: f32[150], index: 1, kind: output, shape index: {}]
  $region1: #{mul.18} parent=0
    #allocation0 [shape = 'u8[4096]{0}', space=vmem, size = 0x1000, scoped, tag = 'scoped mem for output reshape']
    %v2 = vld [vmem:[%s0] sm:$0x1]
    %vm3 = vcmask 203776
    %4 = vst.msk [vmem:[#allocation0] sm:$0x1] %vm3, %v2
    %s5 = scalar_lea.vmem %s0, 5
    %v6 = vld [vmem:[%s5] sm:$0x1]
    %s7 = scalar_lea.vmem %s0, 5
    %v8 = vld [vmem:[%s7] sm:$0x1]
    %vm9 = vcmask 23552
    %v10 = vsel %vm9, %v8, %v6
    %11 = vrot.lane.b32.xlu0 %v10, 125
    %v12 = vpop.permute.xlu0 %11
    %vm13 = vcmask 179200
    %s14 = scalar_lea.vmem [#allocation0], 1
    %15 = vst.msk [vmem:[%s14] sm:$0x1] %vm13, %v12
    %vm16 = vcmask 1048552
    %17 = vst.msk [vmem:[#allocation0] sm:$0x1] %vm16, %v12
    %s18 = scalar_lea.vmem %s0, 4
    %v19 = vld [vmem:[%s18] sm:$0x1]
    %20 = vrot.lane.b32.xlu0 %v19, 100
    %v21 = vpop.permute.xlu0 %20
    %vm22 = vcmask 1023776
    %23 = vst.msk [vmem:[#allocation0] sm:$0x1] %vm22, %v21
    %s24 = scalar_lea.vmem %s0, 3
    %v25 = vld [vmem:[%s24] sm:$0x1]
    %26 = vrot.lane.b32.xlu0 %v25, 75
    %v27 = vpop.permute.xlu0 %26
    %vm28 = vcmask 818776
    %29 = vst.msk [vmem:[#allocation0] sm:$0x1] %vm28, %v27
    %s30 = scalar_lea.vmem %s0, 2
    %v31 = vld [vmem:[%s30] sm:$0x1]
    %32 = vrot.lane.b32.xlu0 %v31, 50
    %v33 = vpop.permute.xlu0 %32
    %vm34 = vcmask 613776
    %35 = vst.msk [vmem:[#allocation0] sm:$0x1] %vm34, %v33
    %s36 = scalar_lea.vmem %s0, 1
    %v37 = vld [vmem:[%s36] sm:$0x1]
    %38 = vrot.lane.b32.xlu0 %v37, 25
    %v39 = vpop.permute.xlu0 %38
    %vm40 = vcmask 408776
    %41 = vst.msk [vmem:[#allocation0] sm:$0x1] %vm40, %v39
    %s43 = sshll.u32 1, 2
    %s44 = ssub.s32 %s43, 1
    %v46 = vld [vmem:[#allocation0] sm:%s44]
    %s47 = sshll.u32 1, 2
    %s48 = ssub.s32 %s47, 1
    %49 = vst [vmem:[%s1] sm:%s48] %v46

// kernel: snn_lenet_forward.4
$region0: #{snn_lenet_forward.4}
  #allocation0 [shape = 'u32[]', space=smem, size = 0x4, offset = 0x4, fixed_abs, tag = 'smem constant byte address 0x4 - core index']
  #allocation1 [shape = 'u32[144,128]{1,0:T(1,128)}', space=vmem, size = 0x12000, scoped, tag = 'internal scratch']
  %s0 = inlined_call_operand.vmem [shape: bf16[150,200], index: 0, kind: input, shape index: {}]
  %s1 = inlined_call_operand.vmem [shape: f32[16,150], index: 1, kind: input, shape index: {}]
  %s2 = inlined_call_operand.vmem [shape: f32[16,1], index: 2, kind: input, shape index: {}]
  %s3 = inlined_call_operand.vmem [shape: bf16[16,200], index: 3, kind: output, shape index: {}]
  %s4 = sld [smem:[#allocation0]]
  $region22: #{snn_lenet_forward.4} parent=0
    _
  %s6 = ssub.s32 1, %s4
  %s7 = scalar_select 0, %s6, %s4
  // Predicated region
  $region2: #{snn_lenet_forward.4} parent=0 // pred_check
    _
  $region3: #{snn_lenet_forward.4} parent=0 // pred_check_branch
    %9 = sbr.rel (0) target = $region5
  $region4: #{snn_lenet_forward.4} parent=0 // pred_region
    _
  $region5: #{snn_lenet_forward.4} parent=0 // pred_fallthru
    _
  // Predicated region
  $region6: #{snn_lenet_forward.4} parent=0 // pred_check
    _
  $region7: #{snn_lenet_forward.4} parent=0 // pred_check_branch
    %11 = sbr.rel (0) target = $region9
  $region8: #{snn_lenet_forward.4} parent=0 // pred_region
    _
  $region9: #{snn_lenet_forward.4} parent=0 // pred_fallthru
    _
  // Predicated region
  $region10: #{snn_lenet_forward.4} parent=0 // pred_check
    _
  $region11: #{snn_lenet_forward.4} parent=0 // pred_check_branch
    %13 = sbr.rel (0) target = $region13
  $region12: #{snn_lenet_forward.4} parent=0 // pred_region
    _
  $region13: #{snn_lenet_forward.4} parent=0 // pred_fallthru
    _
  %v14 = vld [vmem:[%s0] sm:$0xff]
  %v15 = vld [vmem:[%s0 + $0x8] sm:$0xff]
  %v16 = vld [vmem:[%s0 + $0x10] sm:$0xff]
  %v17 = vld [vmem:[%s0 + $0x18] sm:$0xff]
  %v18 = vld [vmem:[%s0 + $0x20] sm:$0xff]
  %v19 = vld [vmem:[%s0 + $0x28] sm:$0xff]
  %v20 = vld [vmem:[%s0 + $0x30] sm:$0xff]
  %v21 = vld [vmem:[%s0 + $0x38] sm:$0xff]
  %v22 = vld [vmem:[%s0 + $0x40] sm:$0xff]
  %v23 = vld [vmem:[%s0 + $0x48] sm:$0xff]
  %v24 = vld [vmem:[%s0 + $0x50] sm:$0xff]
  %v25 = vld [vmem:[%s0 + $0x58] sm:$0xff]
  %v26 = vld [vmem:[%s0 + $0x60] sm:$0xff]
  %v27 = vld [vmem:[%s0 + $0x68] sm:$0xff]
  %v28 = vld [vmem:[%s0 + $0x70] sm:$0xff]
  %v29 = vld [vmem:[%s0 + $0x78] sm:$0xff]
  %v30 = vld [vmem:[%s0 + $0x80] sm:$0xff]
  %v31 = vld [vmem:[%s0 + $0x88] sm:$0xff]
  %v32 = vld [vmem:[%s0 + $0x90] sm:$0x77]
  %v33 = vunpack.c.l.bf16 %v14
  %v34 = vunpack.c.h.bf16 %v14
  %v35 = vunpack.c.l.bf16 %v15
  %v36 = vunpack.c.h.bf16 %v15
  %v37 = vunpack.c.l.bf16 %v16
  %v38 = vunpack.c.h.bf16 %v16
  %v39 = vunpack.c.l.bf16 %v17
  %v40 = vunpack.c.h.bf16 %v17
  %v41 = vunpack.c.l.bf16 %v18
  %v42 = vunpack.c.h.bf16 %v18
  %v43 = vunpack.c.l.bf16 %v19
  %v44 = vunpack.c.h.bf16 %v19
  %v45 = vunpack.c.l.bf16 %v20
  %v46 = vunpack.c.h.bf16 %v20
  %v47 = vunpack.c.l.bf16 %v21
  %v48 = vunpack.c.h.bf16 %v21
  %v49 = vunpack.c.l.bf16 %v22
  %v50 = vunpack.c.h.bf16 %v22
  %v51 = vunpack.c.l.bf16 %v23
  %v52 = vunpack.c.h.bf16 %v23
  %v53 = vunpack.c.l.bf16 %v24
  %v54 = vunpack.c.h.bf16 %v24
  %v55 = vunpack.c.l.bf16 %v25
  %v56 = vunpack.c.h.bf16 %v25
  %v57 = vunpack.c.l.bf16 %v26
  %v58 = vunpack.c.h.bf16 %v26
  %v59 = vunpack.c.l.bf16 %v27
  %v60 = vunpack.c.h.bf16 %v27
  %v61 = vunpack.c.l.bf16 %v28
  %v62 = vunpack.c.h.bf16 %v28
  %v63 = vunpack.c.l.bf16 %v29
  %v64 = vunpack.c.h.bf16 %v29
  %v65 = vunpack.c.l.bf16 %v30
  %v66 = vunpack.c.h.bf16 %v30
  %v67 = vunpack.c.l.bf16 %v31
  %v68 = vunpack.c.h.bf16 %v31
  %v69 = vunpack.c.l.bf16 %v32
  %v70 = vunpack.c.h.bf16 %v32
  %v71 = vld [vmem:[%s1] sm:$0xff]
  %v72 = vld [vmem:[%s1 + $0x8] sm:$0xff]
  %v73 = vld [vmem:[%s1 + $0x10] sm:$0xff]
  %v74 = vld [vmem:[%s1 + $0x18] sm:$0xff]
  %v75 = vld [vmem:[%s2] sm:$0xff]
  %v76 = vld [vmem:[%s2 + $0x8] sm:$0xff]
  %78 = vset.pattern.permute.xlu0 0
  %79 = vperm.xlu0 %78, %v75
  %v80 = vpop.permute.xlu0 %79
  %83 = vset.pattern.permute.xlu0 0
  %84 = vperm.xlu0 %83, %v76
  %v85 = vpop.permute.xlu0 %84
  %vm87 = vcmask 179200
  %v89 = vsel %vm87, %v72, 0
  %v92 = vsel %vm87, %v74, 0
  %vm94 = vcmask 1045504
  %v96 = vsel %vm94, %v69, 0
  %v99 = vsel %vm94, %v70, 0
  %101 = vmatprep.subr.mxu0 %v64
  %102 = vmatpush1.msra.mxu0 %v63
  %103 = vmatprep.subr.mxu0 %v62
  %104 = vmatpush1.msra.mxu0 %v61
  %105 = vmatprep.subr.mxu0 %v60
  %106 = vmatpush1.msra.mxu0 %v59
  %107 = vmatprep.subr.mxu0 %v58
  %108 = vmatpush1.msra.mxu0 %v57
  %109 = vmatprep.subr.mxu0 %v56
  %110 = vmatpush1.msra.mxu0 %v55
  %111 = vmatprep.subr.mxu0 %v54
  %112 = vmatpush1.msra.mxu0 %v53
  %113 = vmatprep.subr.mxu0 %v52
  %114 = vmatpush1.msra.mxu0 %v51
  %115 = vmatprep.subr.mxu0 %v50
  %116 = vmatpush1.msra.mxu0 %v49
  %117 = vmatprep.subr.mxu0 %v48
  %118 = vmatpush1.msra.mxu0 %v47
  %119 = vmatprep.subr.mxu0 %v46
  %120 = vmatpush1.msra.mxu0 %v45
  %121 = vmatprep.subr.mxu0 %v44
  %122 = vmatpush1.msra.mxu0 %v43
  %123 = vmatprep.subr.mxu0 %v42
  %124 = vmatpush1.msra.mxu0 %v41
  %125 = vmatprep.subr.mxu0 %v40
  %126 = vmatpush1.msra.mxu0 %v39
  %127 = vmatprep.subr.mxu0 %v38
  %128 = vmatpush1.msra.mxu0 %v37
  %129 = vmatprep.subr.mxu0 %v36
  %130 = vmatpush1.msra.mxu0 %v35
  %131 = vmatprep.subr.mxu0 %v34
  %132 = vmatpush1.msra.mxu0 %v33
  %133 = vmatprep.subr.mxu0 0.0
  %134 = vmatpush2.msra.mxu0 0.0
  %135 = vmatprep.subr.mxu0 0.0
  %136 = vmatpush2.msra.mxu0 0.0
  %137 = vmatprep.subr.mxu0 0.0
  %138 = vmatpush2.msra.mxu0 0.0
  %139 = vmatprep.subr.mxu0 0.0
  %140 = vmatpush2.msra.mxu0 0.0
  %141 = vmatprep.subr.mxu0 0.0
  %142 = vmatpush2.msra.mxu0 0.0
  %143 = vmatprep.subr.mxu0 0.0
  %144 = vmatpush2.msra.mxu0 0.0
  %145 = vmatprep.subr.mxu0 0.0
  %146 = vmatpush2.msra.mxu0 0.0
  %147 = vmatprep.subr.mxu0 0.0
  %148 = vmatpush2.msra.mxu0 0.0
  %149 = vmatprep.subr.mxu0 0.0
  %150 = vmatpush2.msra.mxu0 0.0
  %151 = vmatprep.subr.mxu0 0.0
  %152 = vmatpush2.msra.mxu0 0.0
  %153 = vmatprep.subr.mxu0 0.0
  %154 = vmatpush2.msra.mxu0 0.0
  %155 = vmatprep.subr.mxu0 0.0
  %156 = vmatpush2.msra.mxu0 0.0
  %157 = vmatprep.subr.mxu0 0.0
  %158 = vmatpush2.msra.mxu0 0.0
  %159 = vmatprep.subr.mxu0 %v99
  %160 = vmatpush2.msra.mxu0 %v96
  %161 = vmatprep.subr.mxu0 %v68
  %162 = vmatpush2.msra.mxu0 %v67
  %163 = vmatprep.subr.mxu0 %v66
  %164 = vmatpush2.msra.mxu0 %v65
  %165 = vmatprep.mubr.f32.mxu0 %v89
  %166 = vmatmul.mubr.f32.gmra.mxu0 %v71
  %v167 = vpop.f32.mrf.mxu0
  %v168 = vadd.f32 %v80, %v167
  %v169 = vpop.f32.mrf.mxu0
  %v170 = vadd.f32 %v80, %v169
  %171 = vmatprep.mubr.f32.mxu0 %v92
  %172 = vmatmul.mubr.f32.gmra.mxu0 %v73
  %v173 = vpop.f32.mrf.mxu0
  %v174 = vadd.f32 %v85, %v173
  %v175 = vpop.f32.mrf.mxu0
  %v176 = vadd.f32 %v85, %v175
  %177 = vdwg.mxu0
  %vm178 = vcmp.ge.f32.partialorder %v168, 1.0
  %vm179 = vcmp.ge.f32.partialorder %v170, 1.0
  %vm180 = vcmp.ge.f32.partialorder %v174, 1.0
  %vm181 = vcmp.ge.f32.partialorder %v176, 1.0
  %v182 = vsel %vm178, 1, 0
  %v183 = vsel %vm179, 1, 0
  %v184 = vsel %vm180, 1, 0
  %v185 = vsel %vm181, 1, 0
  %v186 = vcvt.s32.f32 %v182
  %v187 = vcvt.s32.f32 %v183
  %v188 = vcvt.s32.f32 %v184
  %v189 = vcvt.s32.f32 %v185
  %v190 = vpack.c.bf16 %v188, %v186
  %v191 = vpack.c.bf16 %v189, %v187
  %v194 = vunpack.c.l.b16 %v190
  %v195 = vunpack.c.l.b16 %v191
  %v196 = vunpack.c.h.b16 %v190
  %v197 = vunpack.c.h.b16 %v191
  %v198 = vpack.c.b16 %v195, %v194
  %v199 = vpack.c.b16 %v197, %v196
  %vm202 = vcmask 1043456
  %vm203 = vcmask 588804
  %vm204 = vmor %vm203, %vm202
  %205 = vst.msk [vmem:[%s3] sm:$0xff] %vm204, %v198
  %206 = vst.msk [vmem:[%s3 + $0x8] sm:$0xff] %vm204, %v199
  // Predicated region
  $region14: #{snn_lenet_forward.4} parent=0 // pred_check
    _
  $region15: #{snn_lenet_forward.4} parent=0 // pred_check_branch
    %208 = sbr.rel (0) target = $region17
  $region16: #{snn_lenet_forward.4} parent=0 // pred_region
    _
  $region17: #{snn_lenet_forward.4} parent=0 // pred_fallthru
    _
  // Predicated region
  $region18: #{snn_lenet_forward.4} parent=0 // pred_check
    _
  $region19: #{snn_lenet_forward.4} parent=0 // pred_check_branch
    %210 = sbr.rel (0) target = $region21
  $region20: #{snn_lenet_forward.4} parent=0 // pred_region
    _
  $region21: #{snn_lenet_forward.4} parent=0 // pred_fallthru
    _

// kernel: mul.25
$region0: #{mul.25}
  %s0 = inlined_call_operand.vmem [shape: f32[16,25], index: 0, kind: input, shape index: {}]
  %s1 = inlined_call_operand.vmem [shape: f32[400], index: 1, kind: output, shape index: {}]
  $region1: #{mul.25} parent=0
    #allocation0 [shape = 'u8[4096]{0}', space=vmem, size = 0x1000, scoped, tag = 'scoped mem for output reshape']
    %v2 = vld [vmem:[%s0] sm:$0x1]
    %vm3 = vcmask 203776
    %4 = vst.msk [vmem:[#allocation0] sm:$0x1] %vm3, %v2
    %s5 = scalar_lea.vmem %s0, 5
    %v6 = vld [vmem:[%s5] sm:$0x1]
    %s7 = scalar_lea.vmem %s0, 5
    %v8 = vld [vmem:[%s7] sm:$0x1]
    %vm9 = vcmask 23552
    %v10 = vsel %vm9, %v8, %v6
    %11 = vrot.lane.b32.xlu0 %v10, 125
    %v12 = vpop.permute.xlu0 %11
    %vm13 = vcmask 179200
    %s14 = scalar_lea.vmem [#allocation0], 1
    %15 = vst.msk [vmem:[%s14] sm:$0x1] %vm13, %v12
    %vm16 = vcmask 1048552
    %17 = vst.msk [vmem:[#allocation0] sm:$0x1] %vm16, %v12
    %s18 = scalar_lea.vmem %s0, 10
    %v19 = vld [vmem:[%s18] sm:$0x1]
    %s20 = scalar_lea.vmem %s0, 10
    %v21 = vld [vmem:[%s20] sm:$0x1]
    %vm22 = vcmask 48128
    %v23 = vsel %vm22, %v21, %v19
    %24 = vrot.lane.b32.xlu0 %v23, 122
    %v25 = vpop.permute.xlu0 %24
    %vm26 = vcmask 154624
    %s27 = scalar_lea.vmem [#allocation0], 2
    %28 = vst.msk [vmem:[%s27] sm:$0x1] %vm26, %v25
    %vm29 = vcmask 1048528
    %s30 = scalar_lea.vmem [#allocation0], 1
    %31 = vst.msk [vmem:[%s30] sm:$0x1] %vm29, %v25
    %s32 = scalar_lea.vmem %s0, 15
    %v33 = vld [vmem:[%s32] sm:$0x1]
    %s34 = scalar_lea.vmem %s0, 15
    %v35 = vld [vmem:[%s34] sm:$0x1]
    %vm36 = vcmask 72704
    %v37 = vsel %vm36, %v35, %v33
    %38 = vrot.lane.b32.xlu0 %v37, 119
    %v39 = vpop.permute.xlu0 %38
    %vm40 = vcmask 130048
    %s41 = scalar_lea.vmem [#allocation0], 3
    %42 = vst.msk [vmem:[%s41] sm:$0x1] %vm40, %v39
    %vm43 = vcmask 1048504
    %s44 = scalar_lea.vmem [#allocation0], 2
    %45 = vst.msk [vmem:[%s44] sm:$0x1] %vm43, %v39
    %s46 = scalar_lea.vmem %s0, 4
    %v47 = vld [vmem:[%s46] sm:$0x1]
    %48 = vrot.lane.b32.xlu0 %v47, 100
    %v49 = vpop.permute.xlu0 %48
    %vm50 = vcmask 1023776
    %51 = vst.msk [vmem:[#allocation0] sm:$0x1] %vm50, %v49
    %s52 = scalar_lea.vmem %s0, 9
    %v53 = vld [vmem:[%s52] sm:$0x1]
    %54 = vrot.lane.b32.xlu0 %v53, 97
    %v55 = vpop.permute.xlu0 %54
    %vm56 = vcmask 999176
    %s57 = scalar_lea.vmem [#allocation0], 1
    %58 = vst.msk [vmem:[%s57] sm:$0x1] %vm56, %v55
    %s59 = scalar_lea.vmem %s0, 14
    %v60 = vld [vmem:[%s59] sm:$0x1]
    %61 = vrot.lane.b32.xlu0 %v60, 94
    %v62 = vpop.permute.xlu0 %61
    %vm63 = vcmask 974576
    %s64 = scalar_lea.vmem [#allocation0], 2
    %65 = vst.msk [vmem:[%s64] sm:$0x1] %vm63, %v62
    %s66 = scalar_lea.vmem %s0, 3
    %v67 = vld [vmem:[%s66] sm:$0x1]
    %68 = vrot.lane.b32.xlu0 %v67, 75
    %v69 = vpop.permute.xlu0 %68
    %vm70 = vcmask 818776
    %71 = vst.msk [vmem:[#allocation0] sm:$0x1] %vm70, %v69
    %s72 = scalar_lea.vmem %s0, 8
    %v73 = vld [vmem:[%s72] sm:$0x1]
    %74 = vrot.lane.b32.xlu0 %v73, 72
    %v75 = vpop.permute.xlu0 %74
    %vm76 = vcmask 794176
    %s77 = scalar_lea.vmem [#allocation0], 1
    %78 = vst.msk [vmem:[%s77] sm:$0x1] %vm76, %v75
    %s79 = scalar_lea.vmem %s0, 13
    %v80 = vld [vmem:[%s79] sm:$0x1]
    %81 = vrot.lane.b32.xlu0 %v80, 69
    %v82 = vpop.permute.xlu0 %81
    %vm83 = vcmask 769576
    %s84 = scalar_lea.vmem [#allocation0], 2
    %85 = vst.msk [vmem:[%s84] sm:$0x1] %vm83, %v82
    %s86 = scalar_lea.vmem %s0, 2
    %v87 = vld [vmem:[%s86] sm:$0x1]
    %88 = vrot.lane.b32.xlu0 %v87, 50
    %v89 = vpop.permute.xlu0 %88
    %vm90 = vcmask 613776
    %91 = vst.msk [vmem:[#allocation0] sm:$0x1] %vm90, %v89
    %s92 = scalar_lea.vmem %s0, 7
    %v93 = vld [vmem:[%s92] sm:$0x1]
    %94 = vrot.lane.b32.xlu0 %v93, 47
    %v95 = vpop.permute.xlu0 %94
    %vm96 = vcmask 589176
    %s97 = scalar_lea.vmem [#allocation0], 1
    %98 = vst.msk [vmem:[%s97] sm:$0x1] %vm96, %v95
    %s99 = scalar_lea.vmem %s0, 12
    %v100 = vld [vmem:[%s99] sm:$0x1]
    %101 = vrot.lane.b32.xlu0 %v100, 44
    %v102 = vpop.permute.xlu0 %101
    %vm103 = vcmask 564576
    %s104 = scalar_lea.vmem [#allocation0], 2
    %105 = vst.msk [vmem:[%s104] sm:$0x1] %vm103, %v102
    %s106 = scalar_lea.vmem %s0, 1
    %v107 = vld [vmem:[%s106] sm:$0x1]
    %108 = vrot.lane.b32.xlu0 %v107, 25
    %v109 = vpop.permute.xlu0 %108
    %vm110 = vcmask 408776
    %111 = vst.msk [vmem:[#allocation0] sm:$0x1] %vm110, %v109
    %s112 = scalar_lea.vmem %s0, 6
    %v113 = vld [vmem:[%s112] sm:$0x1]
    %114 = vrot.lane.b32.xlu0 %v113, 22
    %v115 = vpop.permute.xlu0 %114
    %vm116 = vcmask 384176
    %s117 = scalar_lea.vmem [#allocation0], 1
    %118 = vst.msk [vmem:[%s117] sm:$0x1] %vm116, %v115
    %s119 = scalar_lea.vmem %s0, 11
    %v120 = vld [vmem:[%s119] sm:$0x1]
    %121 = vrot.lane.b32.xlu0 %v120, 19
    %v122 = vpop.permute.xlu0 %121
    %vm123 = vcmask 359576
    %s124 = scalar_lea.vmem [#allocation0], 2
    %125 = vst.msk [vmem:[%s124] sm:$0x1] %vm123, %v122
    %s127 = sshll.u32 1, 4
    %s128 = ssub.s32 %s127, 1
    %v130 = vld [vmem:[#allocation0] sm:%s128]
    %s131 = sshll.u32 1, 4
    %s132 = ssub.s32 %s131, 1
    %133 = vst [vmem:[%s1] sm:%s132] %v130

// kernel: snn_lenet_forward.5
$region0: #{snn_lenet_forward.5}
  #allocation0 [shape = 'u32[]', space=smem, size = 0x4, offset = 0x4, fixed_abs, tag = 'smem constant byte address 0x4 - core index']
  #allocation1 [shape = 'u32[144,128]{1,0:T(1,128)}', space=vmem, size = 0x12000, scoped, tag = 'internal scratch']
  #allocation2 [shape = 'f32[1,1]{1,0:T(1,128)S(1)}', space=vmem, size = 0x200, scoped, tag = 'scoped memory for snn_lenet_forward.5']
  #allocation3 [shape = 'f32[1,1]{1,0:T(1,128)S(1)}', space=vmem, size = 0x200, scoped, tag = 'scoped memory for snn_lenet_forward.5']
  #allocation4 [shape = 'f32[1,1]{1,0:T(1,128)S(1)}', space=vmem, size = 0x200, scoped, tag = 'scoped memory for snn_lenet_forward.5']
  #allocation5 [shape = 'f32[1,1]{1,0:T(1,128)S(1)}', space=vmem, size = 0x200, scoped, tag = 'scoped memory for snn_lenet_forward.5']
  %s0 = inlined_call_operand.vmem [shape: bf16[2,400], index: 0, kind: input, shape index: {}]
  %s1 = inlined_call_operand.vmem [shape: f32[400,120], index: 1, kind: input, shape index: {}]
  %s2 = inlined_call_operand.vmem [shape: f32[1,120], index: 2, kind: input, shape index: {}]
  %s3 = inlined_call_operand.<no memory space> [shape: f32[1,1], index: 3, kind: input, shape index: {}]
  %s4 = inlined_call_operand.<no memory space> [shape: f32[1,1], index: 4, kind: input, shape index: {}]
  %s5 = inlined_call_operand.vmem [shape: f32[120,84], index: 5, kind: input, shape index: {}]
  %s6 = inlined_call_operand.vmem [shape: f32[1,84], index: 6, kind: input, shape index: {}]
  %s7 = inlined_call_operand.<no memory space> [shape: f32[1,1], index: 7, kind: input, shape index: {}]
  %s8 = inlined_call_operand.<no memory space> [shape: f32[1,1], index: 8, kind: input, shape index: {}]
  %s9 = inlined_call_operand.vmem [shape: f32[84,10], index: 9, kind: input, shape index: {}]
  %s10 = inlined_call_operand.vmem [shape: f32[1,10], index: 10, kind: input, shape index: {}]
  %s11 = inlined_call_operand.hbm [shape: f32[2,10], index: 11, kind: output, shape index: {}]
  %s12 = sld [smem:[#allocation0]]
  $region54: #{snn_lenet_forward.5} parent=0
    _
  %s14 = ssub.s32 1, %s12
  %s15 = scalar_select 0, %s14, %s12
  %v16 = vstv %s3
  %17 = vst [vmem:[#allocation2] sm:$0x1] %v16
  %v18 = vstv %s4
  %19 = vst [vmem:[#allocation3] sm:$0x1] %v18
  %v20 = vstv %s7
  %21 = vst [vmem:[#allocation4] sm:$0x1] %v20
  %v22 = vstv %s8
  %23 = vst [vmem:[#allocation5] sm:$0x1] %v22
  $region1: #{snn_lenet_forward.5} parent=0
    #allocation6 [shape = 'u8[1024]{0}', space=vmem, size = 0x400, scoped, tag = 'output window, operand 0, single buffered']
    #allocation7 [shape = 's32[1]{0}', space=sflag, size = 0x4, scoped, tag = 'scoped memory for snn_lenet_forward.5']
    %24 = vsyncpa [#allocation7], 0
    // Predicated region
    $region2: #{snn_lenet_forward.5} parent=1 // pred_check
      _
    $region3: #{snn_lenet_forward.5} parent=1 // pred_check_branch
      %26 = sbr.rel (0) target = $region5
    $region4: #{snn_lenet_forward.5} parent=1 // pred_region
      _
    $region5: #{snn_lenet_forward.5} parent=1 // pred_fallthru
      _
    // Predicated region
    $region6: #{snn_lenet_forward.5} parent=1 // pred_check
      _
    $region7: #{snn_lenet_forward.5} parent=1 // pred_check_branch
      %28 = sbr.rel (0) target = $region9
    $region8: #{snn_lenet_forward.5} parent=1 // pred_region
      _
    $region9: #{snn_lenet_forward.5} parent=1 // pred_fallthru
      _
    // Predicated region
    $region10: #{snn_lenet_forward.5} parent=1 // pred_check
      _
    $region11: #{snn_lenet_forward.5} parent=1 // pred_check_branch
      %30 = sbr.rel (0) target = $region13
    $region12: #{snn_lenet_forward.5} parent=1 // pred_region
      _
    $region13: #{snn_lenet_forward.5} parent=1 // pred_fallthru
      _
    // Predicated region
    $region14: #{snn_lenet_forward.5} parent=1 // pred_check
      _
    $region15: #{snn_lenet_forward.5} parent=1 // pred_check_branch
      %32 = sbr.rel (0) target = $region17
    $region16: #{snn_lenet_forward.5} parent=1 // pred_region
      _
    $region17: #{snn_lenet_forward.5} parent=1 // pred_fallthru
      _
    // Predicated region
    $region18: #{snn_lenet_forward.5} parent=1 // pred_check
      _
    $region19: #{snn_lenet_forward.5} parent=1 // pred_check_branch
      %34 = sbr.rel (0) target = $region21
    $region20: #{snn_lenet_forward.5} parent=1 // pred_region
      _
    $region21: #{snn_lenet_forward.5} parent=1 // pred_fallthru
      _
    // Predicated region
    $region22: #{snn_lenet_forward.5} parent=1 // pred_check
      _
    $region23: #{snn_lenet_forward.5} parent=1 // pred_check_branch
      %36 = sbr.rel (0) target = $region25
    $region24: #{snn_lenet_forward.5} parent=1 // pred_region
      _
    $region25: #{snn_lenet_forward.5} parent=1 // pred_fallthru
      _
    // Predicated region
    $region26: #{snn_lenet_forward.5} parent=1 // pred_check
      _
    $region27: #{snn_lenet_forward.5} parent=1 // pred_check_branch
      %38 = sbr.rel (0) target = $region29
    $region28: #{snn_lenet_forward.5} parent=1 // pred_region
      _
    $region29: #{snn_lenet_forward.5} parent=1 // pred_fallthru
      _
    // Predicated region
    $region30: #{snn_lenet_forward.5} parent=1 // pred_check
      _
    $region31: #{snn_lenet_forward.5} parent=1 // pred_check_branch
      %40 = sbr.rel (0) target = $region33
    $region32: #{snn_lenet_forward.5} parent=1 // pred_region
      _
    $region33: #{snn_lenet_forward.5} parent=1 // pred_fallthru
      _
    // Predicated region
    $region34: #{snn_lenet_forward.5} parent=1 // pred_check
      _
    $region35: #{snn_lenet_forward.5} parent=1 // pred_check_branch
      %42 = sbr.rel (0) target = $region37
    $region36: #{snn_lenet_forward.5} parent=1 // pred_region
      _
    $region37: #{snn_lenet_forward.5} parent=1 // pred_fallthru
      _
    // Predicated region
    $region38: #{snn_lenet_forward.5} parent=1 // pred_check
      _
    $region39: #{snn_lenet_forward.5} parent=1 // pred_check_branch
      %44 = sbr.rel (0) target = $region41
    $region40: #{snn_lenet_forward.5} parent=1 // pred_region
      _
    $region41: #{snn_lenet_forward.5} parent=1 // pred_fallthru
      _
    // Predicated region
    $region42: #{snn_lenet_forward.5} parent=1 // pred_check
      _
    $region43: #{snn_lenet_forward.5} parent=1 // pred_check_branch
      %46 = sbr.rel (0) target = $region45
    $region44: #{snn_lenet_forward.5} parent=1 // pred_region
      _
    $region45: #{snn_lenet_forward.5} parent=1 // pred_fallthru
      _
    %v47 = vld [vmem:[%s0] sm:$0xf]
    %v48 = vunpack.c.l.bf16 %v47
    %v49 = vld [vmem:[%s1] sm:$0xff]
    %v50 = vld [vmem:[%s1 + $0x8] sm:$0xff]
    %v51 = vld [vmem:[%s1 + $0x10] sm:$0xff]
    %v52 = vld [vmem:[%s1 + $0x18] sm:$0xff]
    %v53 = vld [vmem:[%s1 + $0x20] sm:$0xff]
    %v54 = vld [vmem:[%s1 + $0x28] sm:$0xff]
    %v55 = vld [vmem:[%s1 + $0x30] sm:$0xff]
    %v56 = vld [vmem:[%s1 + $0x38] sm:$0xff]
    %v57 = vld [vmem:[%s1 + $0x40] sm:$0xff]
    %v58 = vld [vmem:[%s1 + $0x48] sm:$0xff]
    %v59 = vld [vmem:[%s1 + $0x50] sm:$0xff]
    %v60 = vld [vmem:[%s1 + $0x58] sm:$0xff]
    %v61 = vld [vmem:[%s1 + $0x60] sm:$0xff]
    %v62 = vld [vmem:[%s1 + $0x68] sm:$0xff]
    %v63 = vld [vmem:[%s1 + $0x70] sm:$0xff]
    %v64 = vld [vmem:[%s1 + $0x78] sm:$0xff]
    %v65 = vld [vmem:[%s1 + $0x80] sm:$0xff]
    %v66 = vld [vmem:[%s1 + $0x88] sm:$0xff]
    %v67 = vld [vmem:[%s1 + $0x90] sm:$0xff]
    %v68 = vld [vmem:[%s1 + $0x98] sm:$0xff]
    %v69 = vld [vmem:[%s1 + $0xa0] sm:$0xff]
    %v70 = vld [vmem:[%s1 + $0xa8] sm:$0xff]
    %v71 = vld [vmem:[%s1 + $0xb0] sm:$0xff]
    %v72 = vld [vmem:[%s1 + $0xb8] sm:$0xff]
    %v73 = vld [vmem:[%s1 + $0xc0] sm:$0xff]
    %v74 = vld [vmem:[%s1 + $0xc8] sm:$0xff]
    %v75 = vld [vmem:[%s1 + $0xd0] sm:$0xff]
    %v76 = vld [vmem:[%s1 + $0xd8] sm:$0xff]
    %v77 = vld [vmem:[%s1 + $0xe0] sm:$0xff]
    %v78 = vld [vmem:[%s1 + $0xe8] sm:$0xff]
    %v79 = vld [vmem:[%s1 + $0xf0] sm:$0xff]
    %v80 = vld [vmem:[%s1 + $0xf8] sm:$0xff]
    %v81 = vld [vmem:[%s1 + $0x100] sm:$0xff]
    %v82 = vld [vmem:[%s1 + $0x108] sm:$0xff]
    %v83 = vld [vmem:[%s1 + $0x110] sm:$0xff]
    %v84 = vld [vmem:[%s1 + $0x118] sm:$0xff]
    %v85 = vld [vmem:[%s1 + $0x120] sm:$0xff]
    %v86 = vld [vmem:[%s1 + $0x128] sm:$0xff]
    %v87 = vld [vmem:[%s1 + $0x130] sm:$0xff]
    %v88 = vld [vmem:[%s1 + $0x138] sm:$0xff]
    %v89 = vld [vmem:[%s1 + $0x140] sm:$0xff]
    %v90 = vld [vmem:[%s1 + $0x148] sm:$0xff]
    %v91 = vld [vmem:[%s1 + $0x150] sm:$0xff]
    %v92 = vld [vmem:[%s1 + $0x158] sm:$0xff]
    %v93 = vld [vmem:[%s1 + $0x160] sm:$0xff]
    %v94 = vld [vmem:[%s1 + $0x168] sm:$0xff]
    %v95 = vld [vmem:[%s1 + $0x170] sm:$0xff]
    %v96 = vld [vmem:[%s1 + $0x178] sm:$0xff]
    %v97 = vld [vmem:[%s1 + $0x180] sm:$0xff]
    %v98 = vld [vmem:[%s1 + $0x188] sm:$0xff]
    %v99 = vld [vmem:[%s2] sm:$0x1]
    %v101 = vlaneseq
    %v102 = vshrl.u32 %v101, 7
    %v103 = vsub.s32 0, %v102
    %v104 = vrot.slane %v99, %v103
    %v107 = vcombine.high %v48, %v48
    %v109 = vunpack.c.l.s4 1983009808
    %v110 = vunpack.c.0.s8 %v109
    %v111 = vlaneseq
    %v112 = vshrl.u32 %v111, 7
    %v113 = vsub.s32 %v110, %v112
    %v114 = vrot.slane %v48, %v113
    %v116 = vunpack.c.l.s4 1983009808
    %v117 = vunpack.c.0.s8 %v116
    %v118 = vlaneseq
    %v119 = vshrl.u32 %v118, 7
    %v120 = vsub.s32 %v117, %v119
    %v121 = vrot.slane %v107, %v120
    %v122 = vcombine.high %v114, %v114
    %v123 = vcombine.high %v121, %v121
    %vm127 = vcmask 130048
    %v128 = vsel %vm127, %v123, 0
    %130 = vmatprep.subr.mxu0 0.0
    %131 = vmatpush1.msra.mxu0 %v64
    %132 = vmatprep.subr.mxu0 0.0
    %133 = vmatpush1.msra.mxu0 %v63
    %134 = vmatprep.subr.mxu0 0.0
    %135 = vmatpush1.msra.mxu0 %v62
    %136 = vmatprep.subr.mxu0 0.0
    %137 = vmatpush1.msra.mxu0 %v61
    %138 = vmatprep.subr.mxu0 0.0
    %139 = vmatpush1.msra.mxu0 %v60
    %140 = vmatprep.subr.mxu0 0.0
    %141 = vmatpush1.msra.mxu0 %v59
    %142 = vmatprep.subr.mxu0 0.0
    %143 = vmatpush1.msra.mxu0 %v58
    %144 = vmatprep.subr.mxu0 0.0
    %145 = vmatpush1.msra.mxu0 %v57
    %146 = vmatprep.subr.mxu0 0.0
    %147 = vmatpush1.msra.mxu0 %v56
    %148 = vmatprep.subr.mxu0 0.0
    %149 = vmatpush1.msra.mxu0 %v55
    %150 = vmatprep.subr.mxu0 0.0
    %151 = vmatpush1.msra.mxu0 %v54
    %152 = vmatprep.subr.mxu0 0.0
    %153 = vmatpush1.msra.mxu0 %v53
    %154 = vmatprep.subr.mxu0 0.0
    %155 = vmatpush1.msra.mxu0 %v52
    %156 = vmatprep.subr.mxu0 0.0
    %157 = vmatpush1.msra.mxu0 %v51
    %158 = vmatprep.subr.mxu0 0.0
    %159 = vmatpush1.msra.mxu0 %v50
    %160 = vmatprep.subr.mxu0 0.0
    %161 = vmatpush1.msra.mxu0 %v49
    %162 = vmatprep.subr.mxu0 0.0
    %163 = vmatpush2.msra.mxu0 %v80
    %164 = vmatprep.subr.mxu0 0.0
    %165 = vmatpush2.msra.mxu0 %v79
    %166 = vmatprep.subr.mxu0 0.0
    %167 = vmatpush2.msra.mxu0 %v78
    %168 = vmatprep.subr.mxu0 0.0
    %169 = vmatpush2.msra.mxu0 %v77
    %170 = vmatprep.subr.mxu0 0.0
    %171 = vmatpush2.msra.mxu0 %v76
    %172 = vmatprep.subr.mxu0 0.0
    %173 = vmatpush2.msra.mxu0 %v75
    %174 = vmatprep.subr.mxu0 0.0
    %175 = vmatpush2.msra.mxu0 %v74
    %176 = vmatprep.subr.mxu0 0.0
    %177 = vmatpush2.msra.mxu0 %v73
    %178 = vmatprep.subr.mxu0 0.0
    %179 = vmatpush2.msra.mxu0 %v72
    %180 = vmatprep.subr.mxu0 0.0
    %181 = vmatpush2.msra.mxu0 %v71
    %182 = vmatprep.subr.mxu0 0.0
    %183 = vmatpush2.msra.mxu0 %v70
    %184 = vmatprep.subr.mxu0 0.0
    %185 = vmatpush2.msra.mxu0 %v69
    %186 = vmatprep.subr.mxu0 0.0
    %187 = vmatpush2.msra.mxu0 %v68
    %188 = vmatprep.subr.mxu0 0.0
    %189 = vmatpush2.msra.mxu0 %v67
    %190 = vmatprep.subr.mxu0 0.0
    %191 = vmatpush2.msra.mxu0 %v66
    %192 = vmatprep.subr.mxu0 0.0
    %193 = vmatpush2.msra.mxu0 %v65
    %194 = vmatprep.mubr.f32.mxu0 %v122
    %195 = vmatmul.mubr.f32.gmra.mxu0 %v114
    %v196 = vpop.f32.mrf.mxu0
    %v197 = vadd.f32 %v104, %v196
    %v198 = vpop.f32.mrf.mxu0
    %199 = vdwg.mxu0
    %200 = vmatprep.subr.mxu0 0.0
    %201 = vmatpush1.msra.mxu0 %v96
    %202 = vmatprep.subr.mxu0 0.0
    %203 = vmatpush1.msra.mxu0 %v95
    %204 = vmatprep.subr.mxu0 0.0
    %205 = vmatpush1.msra.mxu0 %v94
    %206 = vmatprep.subr.mxu0 0.0
    %207 = vmatpush1.msra.mxu0 %v93
    %208 = vmatprep.subr.mxu0 0.0
    %209 = vmatpush1.msra.mxu0 %v92
    %210 = vmatprep.subr.mxu0 0.0
    %211 = vmatpush1.msra.mxu0 %v91
    %212 = vmatprep.subr.mxu0 0.0
    %213 = vmatpush1.msra.mxu0 %v90
    %214 = vmatprep.subr.mxu0 0.0
    %215 = vmatpush1.msra.mxu0 %v89
    %216 = vmatprep.subr.mxu0 0.0
    %217 = vmatpush1.msra.mxu0 %v88
    %218 = vmatprep.subr.mxu0 0.0
    %219 = vmatpush1.msra.mxu0 %v87
    %220 = vmatprep.subr.mxu0 0.0
    %221 = vmatpush1.msra.mxu0 %v86
    %222 = vmatprep.subr.mxu0 0.0
    %223 = vmatpush1.msra.mxu0 %v85
    %224 = vmatprep.subr.mxu0 0.0
    %225 = vmatpush1.msra.mxu0 %v84
    %226 = vmatprep.subr.mxu0 0.0
    %227 = vmatpush1.msra.mxu0 %v83
    %228 = vmatprep.subr.mxu0 0.0
    %229 = vmatpush1.msra.mxu0 %v82
    %230 = vmatprep.subr.mxu0 0.0
    %231 = vmatpush1.msra.mxu0 %v81
    %232 = vmatprep.subr.mxu0 0.0
    %233 = vmatpush2.msra.mxu0 0.0
    %234 = vmatprep.subr.mxu0 0.0
    %235 = vmatpush2.msra.mxu0 0.0
    %236 = vmatprep.subr.mxu0 0.0
    %237 = vmatpush2.msra.mxu0 0.0
    %238 = vmatprep.subr.mxu0 0.0
    %239 = vmatpush2.msra.mxu0 0.0
    %240 = vmatprep.subr.mxu0 0.0
    %241 = vmatpush2.msra.mxu0 0.0
    %242 = vmatprep.subr.mxu0 0.0
    %243 = vmatpush2.msra.mxu0 0.0
    %244 = vmatprep.subr.mxu0 0.0
    %245 = vmatpush2.msra.mxu0 0.0
    %246 = vmatprep.subr.mxu0 0.0
    %247 = vmatpush2.msra.mxu0 0.0
    %248 = vmatprep.subr.mxu0 0.0
    %249 = vmatpush2.msra.mxu0 0.0
    %250 = vmatprep.subr.mxu0 0.0
    %251 = vmatpush2.msra.mxu0 0.0
    %252 = vmatprep.subr.mxu0 0.0
    %253 = vmatpush2.msra.mxu0 0.0
    %254 = vmatprep.subr.mxu0 0.0
    %255 = vmatpush2.msra.mxu0 0.0
    %256 = vmatprep.subr.mxu0 0.0
    %257 = vmatpush2.msra.mxu0 0.0
    %258 = vmatprep.subr.mxu0 0.0
    %259 = vmatpush2.msra.mxu0 0.0
    %260 = vmatprep.subr.mxu0 0.0
    %261 = vmatpush2.msra.mxu0 %v98
    %262 = vmatprep.subr.mxu0 0.0
    %263 = vmatpush2.msra.mxu0 %v97
    %264 = vmatprep.mubr.f32.mxu0 %v128
    %265 = vmatmul.mubr.f32.gmra.mxu0 %v121
    %v266 = vpop.f32.mrf.mxu0
    %v267 = vadd.f32 %v197, %v266
    %v268 = vpop.f32.mrf.mxu0
    %269 = vdwg.mxu0
    %vm270 = vcmp.ge.f32.partialorder %v267, 1.0
    %v271 = vsel %vm270, 1, 0
    %v272 = vcvt.s32.f32 %v271
    %vm273 = vcmask 975872
    %v274 = vsel %vm273, %v272, 0.0
    %275 = vadd.xlane.f32.xlu0 %v274
    %v276 = vpop.xlane.xlu0 %275
    %v277 = vrcp.pop 120.0
    %v278 = vmul.f32 %v276, %v277
    %vm279 = vcmask 1041408
    %v280 = vsel %vm279, %v278, 0.0
    %v281 = vrot.slane %v280, 4
    %v282 = vadd.f32 %v280, %v281
    %v283 = vrot.slane %v282, 2
    %v284 = vadd.f32 %v282, %v283
    %v285 = vrot.slane %v284, 1
    %v286 = vadd.f32 %v284, %v285
    %v287 = vrcp.pop 2.0
    %v288 = vmul.f32 %v286, %v287
    %v289 = vmul.f32 %v288, %v288
    %v290 = vsub.f32 %v288, %v289
    %v291 = vadd.f32 %v290, 1e-05
    %v292 = vrsqrt.pop %v291
    %v293 = vsub.f32 %v272, %v288
    %v294 = vld [vmem:[#allocation2] sm:$0x1]
    %v295 = vmul.f32 %v292, %v294
    %v297 = vlaneseq
    %v298 = vshrl.u32 %v297, 7
    %v299 = vsub.s32 0, %v298
    %v300 = vrot.slane %v295, %v299
    %301 = vset.pattern.permute.xlu0 0
    %302 = vperm.xlu0 %301, %v300
    %v303 = vpop.permute.xlu0 %302
    %v305 = vmul.f32 %v293, %v303
    %v306 = vld [vmem:[#allocation3] sm:$0x1]
    %v308 = vlaneseq
    %v309 = vshrl.u32 %v308, 7
    %v310 = vsub.s32 0, %v309
    %v311 = vrot.slane %v306, %v310
    %312 = vset.pattern.permute.xlu0 0
    %313 = vperm.xlu0 %312, %v311
    %v314 = vpop.permute.xlu0 %313
    %v316 = vadd.f32 %v305, %v314
    %v317 = vld [vmem:[%s5] sm:$0xff]
    %v318 = vld [vmem:[%s5 + $0x8] sm:$0xff]
    %v319 = vld [vmem:[%s5 + $0x10] sm:$0xff]
    %v320 = vld [vmem:[%s5 + $0x18] sm:$0xff]
    %v321 = vld [vmem:[%s5 + $0x20] sm:$0xff]
    %v322 = vld [vmem:[%s5 + $0x28] sm:$0xff]
    %v323 = vld [vmem:[%s5 + $0x30] sm:$0xff]
    %v324 = vld [vmem:[%s5 + $0x38] sm:$0xff]
    %v325 = vld [vmem:[%s5 + $0x40] sm:$0xff]
    %v326 = vld [vmem:[%s5 + $0x48] sm:$0xff]
    %v327 = vld [vmem:[%s5 + $0x50] sm:$0xff]
    %v328 = vld [vmem:[%s5 + $0x58] sm:$0xff]
    %v329 = vld [vmem:[%s5 + $0x60] sm:$0xff]
    %v330 = vld [vmem:[%s5 + $0x68] sm:$0xff]
    %v331 = vld [vmem:[%s5 + $0x70] sm:$0xff]
    %v332 = vld [vmem:[%s6] sm:$0x1]
    %v334 = vlaneseq
    %v335 = vshrl.u32 %v334, 7
    %v336 = vsub.s32 0, %v335
    %v337 = vrot.slane %v332, %v336
    %vm339 = vcmask 982016
    %v341 = vsel %vm339, %v316, 0
    %343 = vmatprep.subr.mxu0 0.0
    %344 = vmatpush1.msra.mxu0 0.0
    %345 = vmatprep.subr.mxu0 0.0
    %346 = vmatpush1.msra.mxu0 %v331
    %347 = vmatprep.subr.mxu0 0.0
    %348 = vmatpush1.msra.mxu0 %v330
    %349 = vmatprep.subr.mxu0 0.0
    %350 = vmatpush1.msra.mxu0 %v329
    %351 = vmatprep.subr.mxu0 0.0
    %352 = vmatpush1.msra.mxu0 %v328
    %353 = vmatprep.subr.mxu0 0.0
    %354 = vmatpush1.msra.mxu0 %v327
    %355 = vmatprep.subr.mxu0 0.0
    %356 = vmatpush1.msra.mxu0 %v326
    %357 = vmatprep.subr.mxu0 0.0
    %358 = vmatpush1.msra.mxu0 %v325
    %359 = vmatprep.subr.mxu0 0.0
    %360 = vmatpush1.msra.mxu0 %v324
    %361 = vmatprep.subr.mxu0 0.0
    %362 = vmatpush1.msra.mxu0 %v323
    %363 = vmatprep.subr.mxu0 0.0
    %364 = vmatpush1.msra.mxu0 %v322
    %365 = vmatprep.subr.mxu0 0.0
    %366 = vmatpush1.msra.mxu0 %v321
    %367 = vmatprep.subr.mxu0 0.0
    %368 = vmatpush1.msra.mxu0 %v320
    %369 = vmatprep.subr.mxu0 0.0
    %370 = vmatpush1.msra.mxu0 %v319
    %371 = vmatprep.subr.mxu0 0.0
    %372 = vmatpush1.msra.mxu0 %v318
    %373 = vmatprep.subr.mxu0 0.0
    %374 = vmatpush1.msra.mxu0 %v317
    %375 = vmatprep.subr.mxu0 0.0
    %376 = vmatpush2.msra.mxu0 0.0
    %377 = vmatprep.subr.mxu0 0.0
    %378 = vmatpush2.msra.mxu0 0.0
    %379 = vmatprep.subr.mxu0 0.0
    %380 = vmatpush2.msra.mxu0 0.0
    %381 = vmatprep.subr.mxu0 0.0
    %382 = vmatpush2.msra.mxu0 0.0
    %383 = vmatprep.subr.mxu0 0.0
    %384 = vmatpush2.msra.mxu0 0.0
    %385 = vmatprep.subr.mxu0 0.0
    %386 = vmatpush2.msra.mxu0 0.0
    %387 = vmatprep.subr.mxu0 0.0
    %388 = vmatpush2.msra.mxu0 0.0
    %389 = vmatprep.subr.mxu0 0.0
    %390 = vmatpush2.msra.mxu0 0.0
    %391 = vmatprep.subr.mxu0 0.0
    %392 = vmatpush2.msra.mxu0 0.0
    %393 = vmatprep.subr.mxu0 0.0
    %394 = vmatpush2.msra.mxu0 0.0
    %395 = vmatprep.subr.mxu0 0.0
    %396 = vmatpush2.msra.mxu0 0.0
    %397 = vmatprep.subr.mxu0 0.0
    %398 = vmatpush2.msra.mxu0 0.0
    %399 = vmatprep.subr.mxu0 0.0
    %400 = vmatpush2.msra.mxu0 0.0
    %401 = vmatprep.subr.mxu0 0.0
    %402 = vmatpush2.msra.mxu0 0.0
    %403 = vmatprep.subr.mxu0 0.0
    %404 = vmatpush2.msra.mxu0 0.0
    %405 = vmatprep.subr.mxu0 0.0
    %406 = vmatpush2.msra.mxu0 0.0
    %407 = vmatprep.mubr.f32.mxu0 0.0
    %408 = vmatmul.mubr.f32.gmra.mxu0 %v341
    %v409 = vpop.f32.mrf.mxu0
    %v410 = vadd.f32 %v337, %v409
    %v411 = vpop.f32.mrf.mxu0
    %412 = vdwg.mxu0
    %vm413 = vcmp.ge.f32.partialorder %v410, 1.0
    %v414 = vsel %vm413, 1, 0
    %v415 = vcvt.s32.f32 %v414
    %vm416 = vcmask 680960
    %v417 = vsel %vm416, %v415, 0.0
    %418 = vadd.xlane.f32.xlu0 %v417
    %v419 = vpop.xlane.xlu0 %418
    %v420 = vrcp.pop 84.0
    %v421 = vmul.f32 %v419, %v420
    %v422 = vsel %vm279, %v421, 0.0
    %v423 = vrot.slane %v422, 4
    %v424 = vadd.f32 %v422, %v423
    %v425 = vrot.slane %v424, 2
    %v426 = vadd.f32 %v424, %v425
    %v427 = vrot.slane %v426, 1
    %v428 = vadd.f32 %v426, %v427
    %v429 = vmul.f32 %v428, %v287
    %v430 = vmul.f32 %v429, %v429
    %v431 = vsub.f32 %v429, %v430
    %v432 = vadd.f32 %v431, 1e-05
    %v433 = vrsqrt.pop %v432
    %v434 = vsub.f32 %v415, %v429
    %v435 = vld [vmem:[#allocation4] sm:$0x1]
    %v436 = vmul.f32 %v433, %v435
    %v438 = vlaneseq
    %v439 = vshrl.u32 %v438, 7
    %v440 = vsub.s32 0, %v439
    %v441 = vrot.slane %v436, %v440
    %442 = vset.pattern.permute.xlu0 0
    %443 = vperm.xlu0 %442, %v441
    %v444 = vpop.permute.xlu0 %443
    %v446 = vmul.f32 %v434, %v444
    %v447 = vld [vmem:[#allocation5] sm:$0x1]
    %v449 = vlaneseq
    %v450 = vshrl.u32 %v449, 7
    %v451 = vsub.s32 0, %v450
    %v452 = vrot.slane %v447, %v451
    %453 = vset.pattern.permute.xlu0 0
    %454 = vperm.xlu0 %453, %v452
    %v455 = vpop.permute.xlu0 %454
    %v457 = vadd.f32 %v446, %v455
    %v458 = vld [vmem:[%s9] sm:$0xff]
    %v459 = vld [vmem:[%s9 + $0x8] sm:$0xff]
    %v460 = vld [vmem:[%s9 + $0x10] sm:$0xff]
    %v461 = vld [vmem:[%s9 + $0x18] sm:$0xff]
    %v462 = vld [vmem:[%s9 + $0x20] sm:$0xff]
    %v463 = vld [vmem:[%s9 + $0x28] sm:$0xff]
    %v464 = vld [vmem:[%s9 + $0x30] sm:$0xff]
    %v465 = vld [vmem:[%s9 + $0x38] sm:$0xff]
    %v466 = vld [vmem:[%s9 + $0x40] sm:$0xff]
    %v467 = vld [vmem:[%s9 + $0x48] sm:$0xff]
    %v468 = vld [vmem:[%s9 + $0x50] sm:$0xf]
    %v469 = vld [vmem:[%s10] sm:$0x1]
    %v471 = vlaneseq
    %v472 = vshrl.u32 %v471, 7
    %v473 = vsub.s32 0, %v472
    %v474 = vrot.slane %v469, %v473
    %vm476 = vcmask 687104
    %v478 = vsel %vm476, %v457, 0
    %vm480 = vcmask 1043456
    %v482 = vsel %vm480, %v468, 0
    %484 = vmatprep.subr.mxu0 0.0
    %485 = vmatpush1.msra.mxu0 0.0
    %486 = vmatprep.subr.mxu0 0.0
    %487 = vmatpush1.msra.mxu0 0.0
    %488 = vmatprep.subr.mxu0 0.0
    %489 = vmatpush1.msra.mxu0 0.0
    %490 = vmatprep.subr.mxu0 0.0
    %491 = vmatpush1.msra.mxu0 0.0
    %492 = vmatprep.subr.mxu0 0.0
    %493 = vmatpush1.msra.mxu0 0.0
    %494 = vmatprep.subr.mxu0 0.0
    %495 = vmatpush1.msra.mxu0 %v482
    %496 = vmatprep.subr.mxu0 0.0
    %497 = vmatpush1.msra.mxu0 %v467
    %498 = vmatprep.subr.mxu0 0.0
    %499 = vmatpush1.msra.mxu0 %v466
    %500 = vmatprep.subr.mxu0 0.0
    %501 = vmatpush1.msra.mxu0 %v465
    %502 = vmatprep.subr.mxu0 0.0
    %503 = vmatpush1.msra.mxu0 %v464
    %504 = vmatprep.subr.mxu0 0.0
    %505 = vmatpush1.msra.mxu0 %v463
    %506 = vmatprep.subr.mxu0 0.0
    %507 = vmatpush1.msra.mxu0 %v462
    %508 = vmatprep.subr.mxu0 0.0
    %509 = vmatpush1.msra.mxu0 %v461
    %510 = vmatprep.subr.mxu0 0.0
    %511 = vmatpush1.msra.mxu0 %v460
    %512 = vmatprep.subr.mxu0 0.0
    %513 = vmatpush1.msra.mxu0 %v459
    %514 = vmatprep.subr.mxu0 0.0
    %515 = vmatpush1.msra.mxu0 %v458
    %516 = vmatprep.subr.mxu0 0.0
    %517 = vmatpush2.msra.mxu0 0.0
    %518 = vmatprep.subr.mxu0 0.0
    %519 = vmatpush2.msra.mxu0 0.0
    %520 = vmatprep.subr.mxu0 0.0
    %521 = vmatpush2.msra.mxu0 0.0
    %522 = vmatprep.subr.mxu0 0.0
    %523 = vmatpush2.msra.mxu0 0.0
    %524 = vmatprep.subr.mxu0 0.0
    %525 = vmatpush2.msra.mxu0 0.0
    %526 = vmatprep.subr.mxu0 0.0
    %527 = vmatpush2.msra.mxu0 0.0
    %528 = vmatprep.subr.mxu0 0.0
    %529 = vmatpush2.msra.mxu0 0.0
    %530 = vmatprep.subr.mxu0 0.0
    %531 = vmatpush2.msra.mxu0 0.0
    %532 = vmatprep.subr.mxu0 0.0
    %533 = vmatpush2.msra.mxu0 0.0
    %534 = vmatprep.subr.mxu0 0.0
    %535 = vmatpush2.msra.mxu0 0.0
    %536 = vmatprep.subr.mxu0 0.0
    %537 = vmatpush2.msra.mxu0 0.0
    %538 = vmatprep.subr.mxu0 0.0
    %539 = vmatpush2.msra.mxu0 0.0
    %540 = vmatprep.subr.mxu0 0.0
    %541 = vmatpush2.msra.mxu0 0.0
    %542 = vmatprep.subr.mxu0 0.0
    %543 = vmatpush2.msra.mxu0 0.0
    %544 = vmatprep.subr.mxu0 0.0
    %545 = vmatpush2.msra.mxu0 0.0
    %546 = vmatprep.subr.mxu0 0.0
    %547 = vmatpush2.msra.mxu0 0.0
    %548 = vmatprep.mubr.f32.mxu0 0.0
    %549 = vmatmul.mubr.f32.gmra.mxu0 %v478
    %v550 = vpop.f32.mrf.mxu0
    %v551 = vadd.f32 %v474, %v550
    %v552 = vpop.f32.mrf.mxu0
    %553 = vdwg.mxu0
    %vm554 = vcmp.ge.f32.partialorder %v551, 1.0
    %v555 = vsel %vm554, 1, 0
    %v556 = vcvt.s32.f32 %v555
    %vm557 = vcmask 74752
    %558 = vst.msk [vmem:[#allocation6] sm:$0x3] %vm557, %v556
    // Predicated region
    $region46: #{snn_lenet_forward.5} parent=1 // pred_check
      _
    $region47: #{snn_lenet_forward.5} parent=1 // pred_check_branch
      %560 = sbr.rel (0) target = $region49
    $region48: #{snn_lenet_forward.5} parent=1 // pred_region
      %s562 = ssub.s32 32, 32
      %563 = vsyncadd [#allocation7], %s562
      %s565 = sshll.u32 [#allocation6], 4
      %s566 = int_to_ptr.vmem [resolvable:$true] %s565
      %568 = dma.vmem_to_hbm [thread:$0]  %s566, 32, %s11, [#allocation7]
    $region49: #{snn_lenet_forward.5} parent=1 // pred_fallthru
      _
    // Predicated region
    $region50: #{snn_lenet_forward.5} parent=1 // pred_check
      _
    $region51: #{snn_lenet_forward.5} parent=1 // pred_check_branch
      %570 = sbr.rel (0) target = $region53
    $region52: #{snn_lenet_forward.5} parent=1 // pred_region
      %571 = dma.done [#allocation7], 32
    $region53: #{snn_lenet_forward.5} parent=1 // pred_fallthru
      _
    %572 = vsyncpa [#allocation7], 1

</llo_original>
